<compile_context>
chip_gen: v7x
topology: tpu7x:2x2x1
jax: 0.10.0
libtpu: 0.0.40
codegen_flags: <defaults>
</compile_context>

<pallas_src>
import functools

import numpy as np
import jax
import jax.numpy as jnp
from jax.experimental import pallas as pl
from jax.experimental.pallas import tpu as pltpu

AMIN = 1e-10       # LogmelFilterBank.amin
BN_EPS = 1e-5      # nn.BatchNorm2d default eps
LANE = 128


def _round_up(n, m):
    return ((n + m - 1) // m) * m


# ----------------------------------------------------------------------------
# Deterministic parameter construction (librosa is reimplemented in numpy).
# ----------------------------------------------------------------------------
def _hz_to_mel(f):
    return 2595.0 * np.log10(1.0 + np.asarray(f, dtype=np.float64) / 700.0)


def _mel_to_hz(m):
    return 700.0 * (10.0 ** (np.asarray(m, dtype=np.float64) / 2595.0) - 1.0)


def mel_filterbank(sr, n_fft, n_mels, fmin, fmax):
    """Triangular mel filterbank, (n_freqs, n_mels) — stand-in for librosa.filters.mel().T."""
    n_freqs = n_fft // 2 + 1
    fft_freqs = np.linspace(0.0, sr / 2.0, n_freqs)
    mel_pts = np.linspace(_hz_to_mel(fmin), _hz_to_mel(fmax), n_mels + 2)
    hz_pts = _mel_to_hz(mel_pts)
    fb = np.zeros((n_mels, n_freqs), dtype=np.float64)
    for m in range(n_mels):
        lo, c, hi = hz_pts[m], hz_pts[m + 1], hz_pts[m + 2]
        up = (fft_freqs - lo) / max(c - lo, 1e-9)
        down = (hi - fft_freqs) / max(hi - c, 1e-9)
        fb[m] = np.maximum(0.0, np.minimum(up, down))
    enorm = 2.0 / (hz_pts[2:n_mels + 2] - hz_pts[:n_mels])   # slaney-style norm
    fb *= enorm[:, None]
    return fb.T.astype(np.float32)                            # (n_freqs, n_mels)


def stft_weights(n_fft):
    """Real / imag DFT "conv" weights with a periodic hann window, (n_fft, n_freqs)."""
    n = np.arange(n_fft)
    window = 0.5 - 0.5 * np.cos(2.0 * np.pi * n / n_fft)      # hann, fftbins=True
    n_freqs = n_fft // 2 + 1
    k = np.arange(n_freqs)
    ang = 2.0 * np.pi * np.outer(n, k) / n_fft
    w_real = (np.cos(ang) * window[:, None]).astype(np.float32)
    w_imag = (-np.sin(ang) * window[:, None]).astype(np.float32)
    return w_real, w_imag


def _pad2d(x, rows, cols):
    out = np.zeros((rows, cols), dtype=np.float32)
    out[: x.shape[0], : x.shape[1]] = np.asarray(x, dtype=np.float32)
    return out


# ----------------------------------------------------------------------------
# The single fused Pallas kernel.
# ----------------------------------------------------------------------------
def _sed_fused_kernel(chunks_ref, wstft_ref, melw_ref, bn_s_ref, bn_b_ref,
                      cnn_w_ref, cnn_b_ref, tag_ref, enc_w_ref, enc_b_ref,
                      cls_w_ref, cls_b_ref, strong_ref, weak_ref,
                      *, hop, r, t_frames, f_pad):
    # --- STFT (conv1d with hann-windowed DFT weights), frames never materialized.
    # frames[t] = padded[t*hop : t*hop + n_fft]  ==>  sum over the r hop-sized
    # sub-windows of shifted chunk slices times the matching weight rows.
    y = jnp.dot(chunks_ref[0, 0:t_frames, :], wstft_ref[0:hop, :],
                preferred_element_type=jnp.float32)                 # (T, 2*F_pad)
    for j in range(1, r):                                           # r static & small
        y = y + jnp.dot(chunks_ref[0, j:j + t_frames, :],
                        wstft_ref[j * hop:(j + 1) * hop, :],
                        preferred_element_type=jnp.float32)

    real = y[:, :f_pad]                                             # lane-aligned split
    imag = y[:, f_pad:]
    power = real * real + imag * imag                               # Spectrogram, power=2

    # --- LogmelFilterBank: mel matmul + power_to_db (ref=1 -> no offset, top_db=None).
    mel = jnp.dot(power, melw_ref[...], preferred_element_type=jnp.float32)   # (T, M_pad)
    logmel = 10.0 * jnp.log10(jnp.maximum(mel, AMIN))

    # --- bn0 (eval-mode per-mel-bin affine; the transpose(1,3)/BatchNorm2d dance).
    xm = logmel * bn_s_ref[...] + bn_b_ref[...]                     # (T, M_pad)

    # TODO(synk): CNN(n_in_channel=1, **cnn_kwargs) definition is not provided in the
    # reference; stand-in is a per-frame linear projection over mel bins + ReLU.
    h1 = jnp.maximum(jnp.dot(xm, cnn_w_ref[...], preferred_element_type=jnp.float32)
                     + cnn_b_ref[...], 0.0)                         # (T, C_pad)

    # TODO(synk): ConformerEncoder definition is not provided; stand-in is linear + ReLU.
    h2 = jnp.maximum(jnp.dot(h1, enc_w_ref[...], preferred_element_type=jnp.float32)
                     + enc_b_ref[...], 0.0)                         # (T, A_pad)
    strong_ref[0] = (jnp.dot(h2, cls_w_ref[...], preferred_element_type=jnp.float32)
                     + cls_b_ref[...])                              # (T, K_pad)

    # pooling == 'token': tag token = linear_emb(ones) prepended to the sequence.
    # Encoder/classifier stand-ins are per-row, so the tag row is computed directly.
    t2 = jnp.maximum(jnp.dot(tag_ref[...], enc_w_ref[...], preferred_element_type=jnp.float32)
                     + enc_b_ref[...], 0.0)                         # (1, A_pad)
    weak_ref[0] = (jnp.dot(t2, cls_w_ref[...], preferred_element_type=jnp.float32)
                   + cls_b_ref[...])                                # (1, K_pad)


# ----------------------------------------------------------------------------
# SEDModel forward (eval mode, pooling='token').
# ----------------------------------------------------------------------------
def sed_model_forward(wav, params):
    n_fft, hop = params["n_fft"], params["hop"]
    classes = params["classes_num"]
    B, L = wav.shape
    assert n_fft % hop == 0 and L % hop == 0
    r = n_fft // hop
    pad = n_fft // 2
    T = L // hop + 1
    n_chunks = T + r - 1

    # center=True, pad_mode='reflect'; reshape to hop-sized chunks (no gather /
    # no 4x frame duplication in HBM).
    padded = jnp.pad(wav, ((0, 0), (pad, pad)), mode="reflect")     # (B, L + n_fft)
    assert padded.shape[1] == n_chunks * hop
    chunks = padded.reshape(B, n_chunks, hop)

    # TODO(synk): SpecAugmentation / do_mixup are training-only; eval path skips them.

    f_pad = params["w_stft"].shape[1] // 2
    m_pad = params["mel_w"].shape[1]
    c_pad = params["cnn_w"].shape[1]
    a_pad = params["enc_w"].shape[1]
    k_pad = params["cls_w"].shape[1]

    kernel = functools.partial(_sed_fused_kernel, hop=hop, r=r, t_frames=T, f_pad=f_pad)

    strong_pad, weak_pad = pl.pallas_call(
        kernel,
        out_shape=(jax.ShapeDtypeStruct((B, T, k_pad), jnp.float32),
                   jax.ShapeDtypeStruct((B, 1, k_pad), jnp.float32)),
        grid_spec=pltpu.PrefetchScalarGridSpec(
            num_scalar_prefetch=0,
            grid=(B,),
            in_specs=[
                pl.BlockSpec((1, n_chunks, hop), lambda b: (b, 0, 0)),
                pl.BlockSpec((n_fft, 2 * f_pad), lambda b: (0, 0)),
                pl.BlockSpec((f_pad, m_pad), lambda b: (0, 0)),
                pl.BlockSpec((1, m_pad), lambda b: (0, 0)),
                pl.BlockSpec((1, m_pad), lambda b: (0, 0)),
                pl.BlockSpec((m_pad, c_pad), lambda b: (0, 0)),
                pl.BlockSpec((1, c_pad), lambda b: (0, 0)),
                pl.BlockSpec((1, c_pad), lambda b: (0, 0)),
                pl.BlockSpec((c_pad, a_pad), lambda b: (0, 0)),
                pl.BlockSpec((1, a_pad), lambda b: (0, 0)),
                pl.BlockSpec((a_pad, k_pad), lambda b: (0, 0)),
                pl.BlockSpec((1, k_pad), lambda b: (0, 0)),
            ],
            out_specs=[
                pl.BlockSpec((1, T, k_pad), lambda b: (b, 0, 0)),
                pl.BlockSpec((1, 1, k_pad), lambda b: (b, 0, 0)),
            ],
        ),
        compiler_params=pltpu.CompilerParams(dimension_semantics=("parallel",)),
    )(chunks, params["w_stft"], params["mel_w"], params["bn_scale"], params["bn_bias"],
      params["cnn_w"], params["cnn_b"], params["tag"], params["enc_w"], params["enc_b"],
      params["cls_w"], params["cls_b"])

    strong = strong_pad[:, :, :classes]     # framewise logits, rows 1..T of original
    weak = weak_pad[:, 0, :classes]         # tag-token (row 0) logits
    return {"framewise_output": strong, "clipwise_output": weak}


# ----------------------------------------------------------------------------
# Main.
# ----------------------------------------------------------------------------
if __name__ == "__main__":
    # Small, forward-consistent hyperparameters.
    sample_rate = 1600
    window_size = 64           # n_fft
    hop_size = 16
    mel_bins = 16
    fmin, fmax = 50, 700
    classes_num = 10
    input_dim = 32             # cnn.nb_filters[-1]
    adim = 32                  # encoder_kwargs['adim']
    B, L = 2, 256              # batch, audio samples

    key = jax.random.PRNGKey(0)
    k_wav, k_cnn, k_enc, k_cls, k_emb = jax.random.split(key, 5)

    F = window_size // 2 + 1
    F_pad = _round_up(F, LANE)             # lane-dense freq bins (zero padded)
    M_pad = _round_up(mel_bins, LANE)
    C_pad = _round_up(input_dim, LANE)
    A_pad = _round_up(adim, LANE)
    K_pad = _round_up(classes_num, LANE)

    # Combined real|imag STFT weight (single matmul over the same LHS).
    w_real, w_imag = stft_weights(window_size)              # each (n_fft, F)
    w_stft = np.zeros((window_size, 2 * F_pad), np.float32)
    w_stft[:, :F] = w_real
    w_stft[:, F_pad:F_pad + F] = w_imag

    mel_w = _pad2d(mel_filterbank(sample_rate, window_size, mel_bins, fmin, fmax),
                   F_pad, M_pad)

    # bn0 eval-mode affine with default BatchNorm2d init (mean=0, var=1, gamma=1, beta=0).
    bn_scale = np.ones((1, M_pad), np.float32)
    bn_scale[0, :mel_bins] = 1.0 / np.sqrt(1.0 + BN_EPS)
    bn_bias = np.zeros((1, M_pad), np.float32)

    cnn_w_raw = 0.1 * np.asarray(jax.random.normal(k_cnn, (mel_bins, input_dim), jnp.float32))
    enc_w_raw = 0.1 * np.asarray(jax.random.normal(k_enc, (input_dim, adim), jnp.float32))
    cls_w_raw = 0.1 * np.asarray(jax.random.normal(k_cls, (adim, classes_num), jnp.float32))
    emb_w_raw = 0.1 * np.asarray(jax.random.normal(k_emb, (input_dim, 1), jnp.float32))  # Linear(1, C)
    emb_b_raw = np.zeros((input_dim,), np.float32)
    tag_raw = (emb_w_raw[:, 0] + emb_b_raw)[None, :]         # linear_emb(ones) -> (1, C)

    params = {
        "n_fft": window_size,
        "hop": hop_size,
        "classes_num": classes_num,
        "w_stft": jnp.asarray(w_stft),
        "mel_w": jnp.asarray(mel_w),
        "bn_scale": jnp.asarray(bn_scale),
        "bn_bias": jnp.asarray(bn_bias),
        "cnn_w": jnp.asarray(_pad2d(cnn_w_raw, M_pad, C_pad)),
        "cnn_b": jnp.zeros((1, C_pad), jnp.float32),
        "tag": jnp.asarray(_pad2d(tag_raw, 1, C_pad)),
        "enc_w": jnp.asarray(_pad2d(enc_w_raw, C_pad, A_pad)),
        "enc_b": jnp.zeros((1, A_pad), jnp.float32),
        "cls_w": jnp.asarray(_pad2d(cls_w_raw, A_pad, K_pad)),
        "cls_b": jnp.zeros((1, K_pad), jnp.float32),
    }

    wav = 0.5 * jax.random.normal(k_wav, (B, L), jnp.float32)

    out = sed_model_forward(wav, params)
    jax.block_until_ready(out)

    strong = np.asarray(out["framewise_output"])
    weak = np.asarray(out["clipwise_output"])
    T = L // hop_size + 1
    assert strong.shape == (B, T, classes_num), strong.shape
    assert weak.shape == (B, classes_num), weak.shape
    assert np.all(np.isfinite(strong)) and np.all(np.isfinite(weak))
    print("KERNEL_OK")
</pallas_src>

<mosaic_0001>
module attributes {stable_mosaic.version = 11 : i64} {
  func.func @_sed_fused_kernel(%arg0: i32, %arg1: memref<1x20x16xf32, #tpu.memory_space<vmem>>, %arg2: memref<64x256xf32, #tpu.memory_space<vmem>>, %arg3: memref<128x128xf32, #tpu.memory_space<vmem>>, %arg4: memref<1x128xf32, #tpu.memory_space<vmem>>, %arg5: memref<1x128xf32, #tpu.memory_space<vmem>>, %arg6: memref<128x128xf32, #tpu.memory_space<vmem>>, %arg7: memref<1x128xf32, #tpu.memory_space<vmem>>, %arg8: memref<1x128xf32, #tpu.memory_space<vmem>>, %arg9: memref<128x128xf32, #tpu.memory_space<vmem>>, %arg10: memref<1x128xf32, #tpu.memory_space<vmem>>, %arg11: memref<128x128xf32, #tpu.memory_space<vmem>>, %arg12: memref<1x128xf32, #tpu.memory_space<vmem>>, %arg13: memref<1x17x128xf32, #tpu.memory_space<vmem>>, %arg14: memref<1x1x128xf32, #tpu.memory_space<vmem>>) attributes {dimension_semantics = [#tpu.dimension_semantics<parallel>], iteration_bounds = array<i64: 2>, scalar_prefetch = 0 : i64, scratch_operands = 0 : i64, tpu.core_type = #tpu.core_type<tc>, window_params = [{transform_indices = @transform_0, window_bounds = array<i64: 1, 20, 16>}, {pipeline_mode = #tpu.pipeline_mode<synchronous>, transform_indices = @transform_1, window_bounds = array<i64: 64, 256>}, {pipeline_mode = #tpu.pipeline_mode<synchronous>, transform_indices = @transform_2, window_bounds = array<i64: 128, 128>}, {pipeline_mode = #tpu.pipeline_mode<synchronous>, transform_indices = @transform_3, window_bounds = array<i64: 1, 128>}, {pipeline_mode = #tpu.pipeline_mode<synchronous>, transform_indices = @transform_4, window_bounds = array<i64: 1, 128>}, {pipeline_mode = #tpu.pipeline_mode<synchronous>, transform_indices = @transform_5, window_bounds = array<i64: 128, 128>}, {pipeline_mode = #tpu.pipeline_mode<synchronous>, transform_indices = @transform_6, window_bounds = array<i64: 1, 128>}, {pipeline_mode = #tpu.pipeline_mode<synchronous>, transform_indices = @transform_7, window_bounds = array<i64: 1, 128>}, {pipeline_mode = #tpu.pipeline_mode<synchronous>, transform_indices = @transform_8, window_bounds = array<i64: 128, 128>}, {pipeline_mode = #tpu.pipeline_mode<synchronous>, transform_indices = @transform_9, window_bounds = array<i64: 1, 128>}, {pipeline_mode = #tpu.pipeline_mode<synchronous>, transform_indices = @transform_10, window_bounds = array<i64: 128, 128>}, {pipeline_mode = #tpu.pipeline_mode<synchronous>, transform_indices = @transform_11, window_bounds = array<i64: 1, 128>}, {transform_indices = @transform_12, window_bounds = array<i64: 1, 17, 128>}, {transform_indices = @transform_13, window_bounds = array<i64: 1, 1, 128>}]} {
    %c0 = arith.constant 0 : index
    %c0_0 = arith.constant 0 : index
    %c0_1 = arith.constant 0 : index
    %0 = vector.load %arg1[%c0, %c0_0, %c0_1] : memref<1x20x16xf32, #tpu.memory_space<vmem>>, vector<1x17x16xf32>
    %1 = vector.shape_cast %0 : vector<1x17x16xf32> to vector<17x16xf32>
    %c0_2 = arith.constant 0 : index
    %c0_3 = arith.constant 0 : index
    %2 = vector.load %arg2[%c0_2, %c0_3] : memref<64x256xf32, #tpu.memory_space<vmem>>, vector<16x256xf32>
    %cst = arith.constant dense<0.000000e+00> : vector<17x256xf32>
    %3 = tpu.matmul %1, %2, %cst {dimension_numbers = #tpu.dot_dimension_numbers<[1], [0], [0], [1], [0, 0, 1, 1], [], []>} : vector<17x16xf32>, vector<16x256xf32>, vector<17x256xf32> -> vector<17x256xf32>
    %c0_4 = arith.constant 0 : index
    %c1 = arith.constant 1 : index
    %c0_5 = arith.constant 0 : index
    %4 = vector.load %arg1[%c0_4, %c1, %c0_5] : memref<1x20x16xf32, #tpu.memory_space<vmem>>, vector<1x17x16xf32>
    %5 = vector.shape_cast %4 : vector<1x17x16xf32> to vector<17x16xf32>
    %c16 = arith.constant 16 : index
    %c0_6 = arith.constant 0 : index
    %6 = vector.load %arg2[%c16, %c0_6] : memref<64x256xf32, #tpu.memory_space<vmem>>, vector<16x256xf32>
    %cst_7 = arith.constant dense<0.000000e+00> : vector<17x256xf32>
    %7 = tpu.matmul %5, %6, %cst_7 {dimension_numbers = #tpu.dot_dimension_numbers<[1], [0], [0], [1], [0, 0, 1, 1], [], []>} : vector<17x16xf32>, vector<16x256xf32>, vector<17x256xf32> -> vector<17x256xf32>
    %8 = arith.addf %3, %7 : vector<17x256xf32>
    %c0_8 = arith.constant 0 : index
    %c2 = arith.constant 2 : index
    %c0_9 = arith.constant 0 : index
    %9 = vector.load %arg1[%c0_8, %c2, %c0_9] : memref<1x20x16xf32, #tpu.memory_space<vmem>>, vector<1x17x16xf32>
    %10 = vector.shape_cast %9 : vector<1x17x16xf32> to vector<17x16xf32>
    %c32 = arith.constant 32 : index
    %c0_10 = arith.constant 0 : index
    %11 = vector.load %arg2[%c32, %c0_10] : memref<64x256xf32, #tpu.memory_space<vmem>>, vector<16x256xf32>
    %cst_11 = arith.constant dense<0.000000e+00> : vector<17x256xf32>
    %12 = tpu.matmul %10, %11, %cst_11 {dimension_numbers = #tpu.dot_dimension_numbers<[1], [0], [0], [1], [0, 0, 1, 1], [], []>} : vector<17x16xf32>, vector<16x256xf32>, vector<17x256xf32> -> vector<17x256xf32>
    %13 = arith.addf %8, %12 : vector<17x256xf32>
    %c0_12 = arith.constant 0 : index
    %c3 = arith.constant 3 : index
    %c0_13 = arith.constant 0 : index
    %14 = vector.load %arg1[%c0_12, %c3, %c0_13] : memref<1x20x16xf32, #tpu.memory_space<vmem>>, vector<1x17x16xf32>
    %15 = vector.shape_cast %14 : vector<1x17x16xf32> to vector<17x16xf32>
    %c48 = arith.constant 48 : index
    %c0_14 = arith.constant 0 : index
    %16 = vector.load %arg2[%c48, %c0_14] : memref<64x256xf32, #tpu.memory_space<vmem>>, vector<16x256xf32>
    %cst_15 = arith.constant dense<0.000000e+00> : vector<17x256xf32>
    %17 = tpu.matmul %15, %16, %cst_15 {dimension_numbers = #tpu.dot_dimension_numbers<[1], [0], [0], [1], [0, 0, 1, 1], [], []>} : vector<17x16xf32>, vector<16x256xf32>, vector<17x256xf32> -> vector<17x256xf32>
    %18 = arith.addf %13, %17 : vector<17x256xf32>
    %19 = vector.extract_strided_slice %18 {offsets = [0, 0], sizes = [17, 128], strides = [1, 1]} : vector<17x256xf32> to vector<17x128xf32>
    %20 = vector.extract_strided_slice %18 {offsets = [0, 128], sizes = [17, 128], strides = [1, 1]} : vector<17x256xf32> to vector<17x128xf32>
    %21 = arith.mulf %19, %19 : vector<17x128xf32>
    %22 = arith.mulf %20, %20 : vector<17x128xf32>
    %23 = arith.addf %21, %22 : vector<17x128xf32>
    %c0_16 = arith.constant 0 : index
    %c0_17 = arith.constant 0 : index
    %24 = vector.load %arg3[%c0_16, %c0_17] : memref<128x128xf32, #tpu.memory_space<vmem>>, vector<128x128xf32>
    %cst_18 = arith.constant dense<0.000000e+00> : vector<17x128xf32>
    %25 = tpu.matmul %23, %24, %cst_18 {dimension_numbers = #tpu.dot_dimension_numbers<[1], [0], [0], [1], [0, 0, 1, 1], [], []>} : vector<17x128xf32>, vector<128x128xf32>, vector<17x128xf32> -> vector<17x128xf32>
    %cst_19 = arith.constant 1.000000e-10 : f32
    %26 = vector.broadcast %cst_19 : f32 to vector<17x128xf32>
    %27 = arith.maximumf %25, %26 : vector<17x128xf32>
    %28 = math.log %27 : vector<17x128xf32>
    %cst_20 = arith.constant 0.434294492 : f32
    %29 = vector.broadcast %cst_20 : f32 to vector<17x128xf32>
    %30 = arith.mulf %28, %29 : vector<17x128xf32>
    %cst_21 = arith.constant 1.000000e+01 : f32
    %31 = vector.broadcast %cst_21 : f32 to vector<17x128xf32>
    %32 = arith.mulf %31, %30 : vector<17x128xf32>
    %c0_22 = arith.constant 0 : index
    %c0_23 = arith.constant 0 : index
    %33 = vector.load %arg4[%c0_22, %c0_23] : memref<1x128xf32, #tpu.memory_space<vmem>>, vector<1x128xf32>
    %34 = vector.broadcast %33 : vector<1x128xf32> to vector<17x128xf32>
    %35 = arith.mulf %32, %34 : vector<17x128xf32>
    %c0_24 = arith.constant 0 : index
    %c0_25 = arith.constant 0 : index
    %36 = vector.load %arg5[%c0_24, %c0_25] : memref<1x128xf32, #tpu.memory_space<vmem>>, vector<1x128xf32>
    %37 = vector.broadcast %36 : vector<1x128xf32> to vector<17x128xf32>
    %38 = arith.addf %35, %37 : vector<17x128xf32>
    %c0_26 = arith.constant 0 : index
    %c0_27 = arith.constant 0 : index
    %39 = vector.load %arg6[%c0_26, %c0_27] : memref<128x128xf32, #tpu.memory_space<vmem>>, vector<128x128xf32>
    %cst_28 = arith.constant dense<0.000000e+00> : vector<17x128xf32>
    %40 = tpu.matmul %38, %39, %cst_28 {dimension_numbers = #tpu.dot_dimension_numbers<[1], [0], [0], [1], [0, 0, 1, 1], [], []>} : vector<17x128xf32>, vector<128x128xf32>, vector<17x128xf32> -> vector<17x128xf32>
    %c0_29 = arith.constant 0 : index
    %c0_30 = arith.constant 0 : index
    %41 = vector.load %arg7[%c0_29, %c0_30] : memref<1x128xf32, #tpu.memory_space<vmem>>, vector<1x128xf32>
    %42 = vector.broadcast %41 : vector<1x128xf32> to vector<17x128xf32>
    %43 = arith.addf %40, %42 : vector<17x128xf32>
    %cst_31 = arith.constant 0.000000e+00 : f32
    %44 = vector.broadcast %cst_31 : f32 to vector<17x128xf32>
    %45 = arith.maximumf %43, %44 : vector<17x128xf32>
    %c0_32 = arith.constant 0 : index
    %c0_33 = arith.constant 0 : index
    %46 = vector.load %arg9[%c0_32, %c0_33] : memref<128x128xf32, #tpu.memory_space<vmem>>, vector<128x128xf32>
    %cst_34 = arith.constant dense<0.000000e+00> : vector<17x128xf32>
    %47 = tpu.matmul %45, %46, %cst_34 {dimension_numbers = #tpu.dot_dimension_numbers<[1], [0], [0], [1], [0, 0, 1, 1], [], []>} : vector<17x128xf32>, vector<128x128xf32>, vector<17x128xf32> -> vector<17x128xf32>
    %c0_35 = arith.constant 0 : index
    %c0_36 = arith.constant 0 : index
    %48 = vector.load %arg10[%c0_35, %c0_36] : memref<1x128xf32, #tpu.memory_space<vmem>>, vector<1x128xf32>
    %49 = vector.broadcast %48 : vector<1x128xf32> to vector<17x128xf32>
    %50 = arith.addf %47, %49 : vector<17x128xf32>
    %cst_37 = arith.constant 0.000000e+00 : f32
    %51 = vector.broadcast %cst_37 : f32 to vector<17x128xf32>
    %52 = arith.maximumf %50, %51 : vector<17x128xf32>
    %c0_38 = arith.constant 0 : index
    %c0_39 = arith.constant 0 : index
    %53 = vector.load %arg11[%c0_38, %c0_39] : memref<128x128xf32, #tpu.memory_space<vmem>>, vector<128x128xf32>
    %cst_40 = arith.constant dense<0.000000e+00> : vector<17x128xf32>
    %54 = tpu.matmul %52, %53, %cst_40 {dimension_numbers = #tpu.dot_dimension_numbers<[1], [0], [0], [1], [0, 0, 1, 1], [], []>} : vector<17x128xf32>, vector<128x128xf32>, vector<17x128xf32> -> vector<17x128xf32>
    %c0_41 = arith.constant 0 : index
    %c0_42 = arith.constant 0 : index
    %55 = vector.load %arg12[%c0_41, %c0_42] : memref<1x128xf32, #tpu.memory_space<vmem>>, vector<1x128xf32>
    %56 = vector.broadcast %55 : vector<1x128xf32> to vector<17x128xf32>
    %57 = arith.addf %54, %56 : vector<17x128xf32>
    %c0_43 = arith.constant 0 : index
    %c0_44 = arith.constant 0 : index
    %c0_45 = arith.constant 0 : index
    %58 = vector.load %arg13[%c0_43, %c0_44, %c0_45] : memref<1x17x128xf32, #tpu.memory_space<vmem>>, vector<1x17x128xf32>
    %59 = vector.shape_cast %58 : vector<1x17x128xf32> to vector<17x128xf32>
    %60 = vector.shape_cast %57 : vector<17x128xf32> to vector<1x17x128xf32>
    tpu.vector_store %arg13[%c0_43, %c0_44, %c0_45], %60 {strides = array<i32>} : memref<1x17x128xf32, #tpu.memory_space<vmem>>, vector<1x17x128xf32>,
    %c0_46 = arith.constant 0 : index
    %c0_47 = arith.constant 0 : index
    %61 = vector.load %arg8[%c0_46, %c0_47] : memref<1x128xf32, #tpu.memory_space<vmem>>, vector<1x128xf32>
    %c0_48 = arith.constant 0 : index
    %c0_49 = arith.constant 0 : index
    %62 = vector.load %arg9[%c0_48, %c0_49] : memref<128x128xf32, #tpu.memory_space<vmem>>, vector<128x128xf32>
    %cst_50 = arith.constant dense<0.000000e+00> : vector<1x128xf32>
    %63 = tpu.matmul %61, %62, %cst_50 {dimension_numbers = #tpu.dot_dimension_numbers<[1], [0], [0], [1], [0, 0, 1, 1], [], []>} : vector<1x128xf32>, vector<128x128xf32>, vector<1x128xf32> -> vector<1x128xf32>
    %c0_51 = arith.constant 0 : index
    %c0_52 = arith.constant 0 : index
    %64 = vector.load %arg10[%c0_51, %c0_52] : memref<1x128xf32, #tpu.memory_space<vmem>>, vector<1x128xf32>
    %65 = arith.addf %63, %64 : vector<1x128xf32>
    %cst_53 = arith.constant 0.000000e+00 : f32
    %66 = vector.broadcast %cst_53 : f32 to vector<1x128xf32>
    %67 = arith.maximumf %65, %66 : vector<1x128xf32>
    %c0_54 = arith.constant 0 : index
    %c0_55 = arith.constant 0 : index
    %68 = vector.load %arg11[%c0_54, %c0_55] : memref<128x128xf32, #tpu.memory_space<vmem>>, vector<128x128xf32>
    %cst_56 = arith.constant dense<0.000000e+00> : vector<1x128xf32>
    %69 = tpu.matmul %67, %68, %cst_56 {dimension_numbers = #tpu.dot_dimension_numbers<[1], [0], [0], [1], [0, 0, 1, 1], [], []>} : vector<1x128xf32>, vector<128x128xf32>, vector<1x128xf32> -> vector<1x128xf32>
    %c0_57 = arith.constant 0 : index
    %c0_58 = arith.constant 0 : index
    %70 = vector.load %arg12[%c0_57, %c0_58] : memref<1x128xf32, #tpu.memory_space<vmem>>, vector<1x128xf32>
    %71 = arith.addf %69, %70 : vector<1x128xf32>
    %c0_59 = arith.constant 0 : index
    %c0_60 = arith.constant 0 : index
    %c0_61 = arith.constant 0 : index
    %72 = vector.load %arg14[%c0_59, %c0_60, %c0_61] : memref<1x1x128xf32, #tpu.memory_space<vmem>>, vector<1x1x128xf32>
    %73 = vector.shape_cast %72 : vector<1x1x128xf32> to vector<1x128xf32>
    %74 = vector.shape_cast %71 : vector<1x128xf32> to vector<1x1x128xf32>
    tpu.vector_store %arg14[%c0_59, %c0_60, %c0_61], %74 {strides = array<i32>} : memref<1x1x128xf32, #tpu.memory_space<vmem>>, vector<1x1x128xf32>,
    return
  }
  func.func @transform_0(%arg0: i32) -> (i32, i32, i32) {
    %c0_i32 = arith.constant 0 : i32
    %c0_i32_0 = arith.constant 0 : i32
    %c0_i32_1 = arith.constant 0 : i32
    return %arg0, %c0_i32, %c0_i32_0 : i32, i32, i32
  }
  func.func @transform_1(%arg0: i32) -> (i32, i32) {
    %c0_i32 = arith.constant 0 : i32
    %c0_i32_0 = arith.constant 0 : i32
    %c0_i32_1 = arith.constant 0 : i32
    return %c0_i32, %c0_i32_0 : i32, i32
  }
  func.func @transform_2(%arg0: i32) -> (i32, i32) {
    %c0_i32 = arith.constant 0 : i32
    %c0_i32_0 = arith.constant 0 : i32
    %c0_i32_1 = arith.constant 0 : i32
    return %c0_i32, %c0_i32_0 : i32, i32
  }
  func.func @transform_3(%arg0: i32) -> (i32, i32) {
    %c0_i32 = arith.constant 0 : i32
    %c0_i32_0 = arith.constant 0 : i32
    %c0_i32_1 = arith.constant 0 : i32
    return %c0_i32, %c0_i32_0 : i32, i32
  }
  func.func @transform_4(%arg0: i32) -> (i32, i32) {
    %c0_i32 = arith.constant 0 : i32
    %c0_i32_0 = arith.constant 0 : i32
    %c0_i32_1 = arith.constant 0 : i32
    return %c0_i32, %c0_i32_0 : i32, i32
  }
  func.func @transform_5(%arg0: i32) -> (i32, i32) {
    %c0_i32 = arith.constant 0 : i32
    %c0_i32_0 = arith.constant 0 : i32
    %c0_i32_1 = arith.constant 0 : i32
    return %c0_i32, %c0_i32_0 : i32, i32
  }
  func.func @transform_6(%arg0: i32) -> (i32, i32) {
    %c0_i32 = arith.constant 0 : i32
    %c0_i32_0 = arith.constant 0 : i32
    %c0_i32_1 = arith.constant 0 : i32
    return %c0_i32, %c0_i32_0 : i32, i32
  }
  func.func @transform_7(%arg0: i32) -> (i32, i32) {
    %c0_i32 = arith.constant 0 : i32
    %c0_i32_0 = arith.constant 0 : i32
    %c0_i32_1 = arith.constant 0 : i32
    return %c0_i32, %c0_i32_0 : i32, i32
  }
  func.func @transform_8(%arg0: i32) -> (i32, i32) {
    %c0_i32 = arith.constant 0 : i32
    %c0_i32_0 = arith.constant 0 : i32
    %c0_i32_1 = arith.constant 0 : i32
    return %c0_i32, %c0_i32_0 : i32, i32
  }
  func.func @transform_9(%arg0: i32) -> (i32, i32) {
    %c0_i32 = arith.constant 0 : i32
    %c0_i32_0 = arith.constant 0 : i32
    %c0_i32_1 = arith.constant 0 : i32
    return %c0_i32, %c0_i32_0 : i32, i32
  }
  func.func @transform_10(%arg0: i32) -> (i32, i32) {
    %c0_i32 = arith.constant 0 : i32
    %c0_i32_0 = arith.constant 0 : i32
    %c0_i32_1 = arith.constant 0 : i32
    return %c0_i32, %c0_i32_0 : i32, i32
  }
  func.func @transform_11(%arg0: i32) -> (i32, i32) {
    %c0_i32 = arith.constant 0 : i32
    %c0_i32_0 = arith.constant 0 : i32
    %c0_i32_1 = arith.constant 0 : i32
    return %c0_i32, %c0_i32_0 : i32, i32
  }
  func.func @transform_12(%arg0: i32) -> (i32, i32, i32) {
    %c0_i32 = arith.constant 0 : i32
    %c0_i32_0 = arith.constant 0 : i32
    %c0_i32_1 = arith.constant 0 : i32
    return %arg0, %c0_i32, %c0_i32_0 : i32, i32, i32
  }
  func.func @transform_13(%arg0: i32) -> (i32, i32, i32) {
    %c0_i32 = arith.constant 0 : i32
    %c0_i32_0 = arith.constant 0 : i32
    %c0_i32_1 = arith.constant 0 : i32
    return %arg0, %c0_i32, %c0_i32_0 : i32, i32, i32
  }
}

</mosaic_0001>

<llo_original>
// kernel: tpu_custom_call.1
$region0: #{tpu_custom_call.1}
  #allocation0 [shape = 'u32[]', space=smem, size = 0x4, offset = 0x4, fixed_abs, tag = 'smem constant byte address 0x4 - core index']
  #allocation1 [shape = 'u32[144,128]{1,0:T(1,128)}', space=vmem, size = 0x12000, scoped, tag = 'internal scratch']
  %s0 = inlined_call_operand.vmem [shape: f32[2,20,16], index: 0, kind: input, shape index: {}]
  %s1 = inlined_call_operand.hbm [shape: f32[64,256], index: 1, kind: input, shape index: {}]
  %s2 = inlined_call_operand.hbm [shape: f32[128,128], index: 2, kind: input, shape index: {}]
  %s3 = inlined_call_operand.vmem [shape: f32[1,128], index: 3, kind: input, shape index: {}]
  %s4 = inlined_call_operand.vmem [shape: f32[1,128], index: 4, kind: input, shape index: {}]
  %s5 = inlined_call_operand.hbm [shape: f32[128,128], index: 5, kind: input, shape index: {}]
  %s6 = inlined_call_operand.vmem [shape: f32[1,128], index: 6, kind: input, shape index: {}]
  %s7 = inlined_call_operand.vmem [shape: f32[1,128], index: 7, kind: input, shape index: {}]
  %s8 = inlined_call_operand.hbm [shape: f32[128,128], index: 8, kind: input, shape index: {}]
  %s9 = inlined_call_operand.vmem [shape: f32[1,128], index: 9, kind: input, shape index: {}]
  %s10 = inlined_call_operand.hbm [shape: f32[128,128], index: 10, kind: input, shape index: {}]
  %s11 = inlined_call_operand.vmem [shape: f32[1,128], index: 11, kind: input, shape index: {}]
  %s12 = inlined_call_operand.vmem [shape: f32[2,17,128], index: 12, kind: output, shape index: {0}]
  %s13 = inlined_call_operand.hbm [shape: f32[2,1,128], index: 13, kind: output, shape index: {1}]
  %14 = xla_tuple %s12, %s13
  %s15 = sld [smem:[#allocation0]]
  $region109: #{tpu_custom_call.1} parent=0
    _
  %s17 = ssub.s32 1, %s15
  %s18 = scalar_select 0, %s17, %s15
  $region1: #{tpu_custom_call.1} parent=0
    #allocation2 [shape = 'u8[65536]{0}', space=vmem, size = 0x10000, scoped, tag = 'input window, operand 1, single buffered']
    #allocation3 [shape = 's32[2]{0}', space=sflag, size = 0x8, scoped, tag = 'scoped memory for tpu_custom_call.1']
    #allocation4 [shape = 's32[2]{0}', space=sflag, size = 0x8, scoped, tag = 'scoped memory for tpu_custom_call.1']
    #allocation5 [shape = 'u8[65536]{0}', space=vmem, size = 0x10000, scoped, tag = 'input window, operand 2, single buffered']
    #allocation6 [shape = 's32[1]{0}', space=sflag, size = 0x4, scoped, tag = 'scoped memory for tpu_custom_call.1']
    #allocation7 [shape = 'u8[65536]{0}', space=vmem, size = 0x10000, scoped, tag = 'input window, operand 5, single buffered']
    #allocation8 [shape = 'u8[65536]{0}', space=vmem, size = 0x10000, scoped, tag = 'input window, operand 8, single buffered']
    #allocation9 [shape = 's32[1]{0}', space=sflag, size = 0x4, scoped, tag = 'scoped memory for tpu_custom_call.1']
    #allocation10 [shape = 'u8[65536]{0}', space=vmem, size = 0x10000, scoped, tag = 'input window, operand 10, single buffered']
    #allocation11 [shape = 'u8[1024]{0}', space=vmem, size = 0x400, scoped, tag = 'output window, operand 1']
    %19 = vsyncpa [#allocation3], 0
    %20 = vsyncpa [#allocation6], 0
    %21 = vsyncpa [#allocation9], 0
    %22 = vsyncpa [#allocation4], 0
    %s23 = scalar_lea.sflag [#allocation4], 1
    %24 = vsyncpa %s23, 0
    loop: start=0, step=1, limit=4
    $region2: #{tpu_custom_call.1} parent=1 // loop_pre_header
      _
    $region3: #{tpu_custom_call.1} parent=1 // loop_header
      %s26 = sphi 0, %s30
      %p27 = scmp.ge.s32.totalorder %s26, 4
      %s36 = sphi 0, %s38
      %s39 = sphi 0, %s36
      %s40 = sphi 0, %s39
      %s56 = sphi 0, %s40
      %s60 = sphi 0, %s60
      %s62 = sphi 0, %s60
      %s63 = sphi 0, %s62
      %s77 = sphi 0, %s63
      %s81 = sphi 0, %s81
      %s83 = sphi 0, %s81
      %s84 = sphi 0, %s83
      %s98 = sphi 0, %s84
      %s102 = sphi 0, %s102
      %s104 = sphi 0, %s102
      %s105 = sphi 0, %s104
      %s119 = sphi 0, %s105
      %s123 = sphi 0, %s123
      %s125 = sphi 0, %s123
      %s126 = sphi 0, %s125
      %s140 = sphi 0, %s126
      %s144 = sphi 0, %s144
      %s146 = sphi 0, %s144
      %s147 = sphi 0, %s146
      %s161 = sphi 0, %s147
      %s165 = sphi 0, %s165
      %s167 = sphi 0, %s165
      %s168 = sphi 0, %s167
      %s182 = sphi 0, %s168
      %s186 = sphi 0, %s186
      %s188 = sphi 0, %s186
      %s189 = sphi 0, %s188
      %s203 = sphi 0, %s189
      %s207 = sphi 0, %s207
      %s209 = sphi 0, %s207
      %s210 = sphi 0, %s209
      %s224 = sphi 0, %s210
      %s228 = sphi 0, %s228
      %s230 = sphi 0, %s228
      %s231 = sphi 0, %s230
      %s245 = sphi 0, %s231
      %s249 = sphi 0, %s249
      %s251 = sphi 0, %s249
      %s252 = sphi 0, %s251
      %s266 = sphi 0, %s252
      %s270 = sphi 0, %s270
      %s272 = sphi 0, %s270
      %s273 = sphi 0, %s272
      %s287 = sphi 0, %s273
      %s293 = sphi 0, %s295
      %s296 = sphi 0, %s293
      %s297 = sphi 0, %s296
      %s313 = sphi 0, %s297
      %s319 = sphi 0, %s321
      %s322 = sphi 0, %s319
      %s323 = sphi 0, %s322
      %s339 = sphi 0, %s323
    $region4: #{tpu_custom_call.1} parent=1 // loop_header_branch
      %29 = sbr.rel (%p27) target = $region8
    $region5: #{tpu_custom_call.1} parent=1 // loop_body
      %s31 = ssub.s32 %s26, 1
      %s32 = ssub.s32 %s26, 2
      %s33 = sadd.s32 %s26, 1
      %s34 = ssub.s32 %s26, %s33
      %p35 = scmp.eq.s32.totalorder %s34, 0
      %s37 = sadd.s32 %s36, 1
      %s38 = scalar_select %p35, %s36, %s37
      %p41 = pneg %p35
      %p42 = scmp.eq.s32.totalorder %s26, 1
      %p43 = por %p41, %p42
      %p44 = scmp.ne.s32.totalorder %s36, %s39
      %p45 = scmp.eq.s32.totalorder %s26, 0
      %p46 = por %p44, %p45
      %p47 = scmp.ne.s32.totalorder %s36, %s39
      %p48 = scmp.eq.s32.totalorder %s31, 1
      %p49 = por %p47, %p48
      %p50 = scmp.ne.s32.totalorder %s39, %s40
      %p51 = scmp.eq.s32.totalorder %s31, 0
      %p52 = por %p50, %p51
      %p53 = scmp.ne.s32.totalorder %s39, %s40
      %p54 = scmp.eq.s32.totalorder %s32, 1
      %p55 = por %p53, %p54
      %p57 = scmp.ne.s32.totalorder %s40, %s56
      %p58 = scmp.eq.s32.totalorder %s32, 0
      %p59 = por %p57, %p58
      %s61 = sadd.s32 %s60, 1
      %p64 = scmp.eq.s32.totalorder %s26, 1
      %p65 = scmp.ne.s32.totalorder %s60, %s62
      %p66 = scmp.eq.s32.totalorder %s26, 0
      %p67 = por %p65, %p66
      %p68 = scmp.ne.s32.totalorder %s60, %s62
      %p69 = scmp.eq.s32.totalorder %s31, 1
      %p70 = por %p68, %p69
      %p71 = scmp.ne.s32.totalorder %s62, %s63
      %p72 = scmp.eq.s32.totalorder %s31, 0
      %p73 = por %p71, %p72
      %p74 = scmp.ne.s32.totalorder %s62, %s63
      %p75 = scmp.eq.s32.totalorder %s32, 1
      %p76 = por %p74, %p75
      %p78 = scmp.ne.s32.totalorder %s63, %s77
      %p79 = scmp.eq.s32.totalorder %s32, 0
      %p80 = por %p78, %p79
      %s82 = sadd.s32 %s81, 1
      %p85 = scmp.eq.s32.totalorder %s26, 1
      %p86 = scmp.ne.s32.totalorder %s81, %s83
      %p87 = scmp.eq.s32.totalorder %s26, 0
      %p88 = por %p86, %p87
      %p89 = scmp.ne.s32.totalorder %s81, %s83
      %p90 = scmp.eq.s32.totalorder %s31, 1
      %p91 = por %p89, %p90
      %p92 = scmp.ne.s32.totalorder %s83, %s84
      %p93 = scmp.eq.s32.totalorder %s31, 0
      %p94 = por %p92, %p93
      %p95 = scmp.ne.s32.totalorder %s83, %s84
      %p96 = scmp.eq.s32.totalorder %s32, 1
      %p97 = por %p95, %p96
      %p99 = scmp.ne.s32.totalorder %s84, %s98
      %p100 = scmp.eq.s32.totalorder %s32, 0
      %p101 = por %p99, %p100
      %s103 = sadd.s32 %s102, 1
      %p106 = scmp.eq.s32.totalorder %s26, 1
      %p107 = scmp.ne.s32.totalorder %s102, %s104
      %p108 = scmp.eq.s32.totalorder %s26, 0
      %p109 = por %p107, %p108
      %p110 = scmp.ne.s32.totalorder %s102, %s104
      %p111 = scmp.eq.s32.totalorder %s31, 1
      %p112 = por %p110, %p111
      %p113 = scmp.ne.s32.totalorder %s104, %s105
      %p114 = scmp.eq.s32.totalorder %s31, 0
      %p115 = por %p113, %p114
      %p116 = scmp.ne.s32.totalorder %s104, %s105
      %p117 = scmp.eq.s32.totalorder %s32, 1
      %p118 = por %p116, %p117
      %p120 = scmp.ne.s32.totalorder %s105, %s119
      %p121 = scmp.eq.s32.totalorder %s32, 0
      %p122 = por %p120, %p121
      %s124 = sadd.s32 %s123, 1
      %p127 = scmp.eq.s32.totalorder %s26, 1
      %p128 = scmp.ne.s32.totalorder %s123, %s125
      %p129 = scmp.eq.s32.totalorder %s26, 0
      %p130 = por %p128, %p129
      %p131 = scmp.ne.s32.totalorder %s123, %s125
      %p132 = scmp.eq.s32.totalorder %s31, 1
      %p133 = por %p131, %p132
      %p134 = scmp.ne.s32.totalorder %s125, %s126
      %p135 = scmp.eq.s32.totalorder %s31, 0
      %p136 = por %p134, %p135
      %p137 = scmp.ne.s32.totalorder %s125, %s126
      %p138 = scmp.eq.s32.totalorder %s32, 1
      %p139 = por %p137, %p138
      %p141 = scmp.ne.s32.totalorder %s126, %s140
      %p142 = scmp.eq.s32.totalorder %s32, 0
      %p143 = por %p141, %p142
      %s145 = sadd.s32 %s144, 1
      %p148 = scmp.eq.s32.totalorder %s26, 1
      %p149 = scmp.ne.s32.totalorder %s144, %s146
      %p150 = scmp.eq.s32.totalorder %s26, 0
      %p151 = por %p149, %p150
      %p152 = scmp.ne.s32.totalorder %s144, %s146
      %p153 = scmp.eq.s32.totalorder %s31, 1
      %p154 = por %p152, %p153
      %p155 = scmp.ne.s32.totalorder %s146, %s147
      %p156 = scmp.eq.s32.totalorder %s31, 0
      %p157 = por %p155, %p156
      %p158 = scmp.ne.s32.totalorder %s146, %s147
      %p159 = scmp.eq.s32.totalorder %s32, 1
      %p160 = por %p158, %p159
      %p162 = scmp.ne.s32.totalorder %s147, %s161
      %p163 = scmp.eq.s32.totalorder %s32, 0
      %p164 = por %p162, %p163
      %s166 = sadd.s32 %s165, 1
      %p169 = scmp.eq.s32.totalorder %s26, 1
      %p170 = scmp.ne.s32.totalorder %s165, %s167
      %p171 = scmp.eq.s32.totalorder %s26, 0
      %p172 = por %p170, %p171
      %p173 = scmp.ne.s32.totalorder %s165, %s167
      %p174 = scmp.eq.s32.totalorder %s31, 1
      %p175 = por %p173, %p174
      %p176 = scmp.ne.s32.totalorder %s167, %s168
      %p177 = scmp.eq.s32.totalorder %s31, 0
      %p178 = por %p176, %p177
      %p179 = scmp.ne.s32.totalorder %s167, %s168
      %p180 = scmp.eq.s32.totalorder %s32, 1
      %p181 = por %p179, %p180
      %p183 = scmp.ne.s32.totalorder %s168, %s182
      %p184 = scmp.eq.s32.totalorder %s32, 0
      %p185 = por %p183, %p184
      %s187 = sadd.s32 %s186, 1
      %p190 = scmp.eq.s32.totalorder %s26, 1
      %p191 = scmp.ne.s32.totalorder %s186, %s188
      %p192 = scmp.eq.s32.totalorder %s26, 0
      %p193 = por %p191, %p192
      %p194 = scmp.ne.s32.totalorder %s186, %s188
      %p195 = scmp.eq.s32.totalorder %s31, 1
      %p196 = por %p194, %p195
      %p197 = scmp.ne.s32.totalorder %s188, %s189
      %p198 = scmp.eq.s32.totalorder %s31, 0
      %p199 = por %p197, %p198
      %p200 = scmp.ne.s32.totalorder %s188, %s189
      %p201 = scmp.eq.s32.totalorder %s32, 1
      %p202 = por %p200, %p201
      %p204 = scmp.ne.s32.totalorder %s189, %s203
      %p205 = scmp.eq.s32.totalorder %s32, 0
      %p206 = por %p204, %p205
      %s208 = sadd.s32 %s207, 1
      %p211 = scmp.eq.s32.totalorder %s26, 1
      %p212 = scmp.ne.s32.totalorder %s207, %s209
      %p213 = scmp.eq.s32.totalorder %s26, 0
      %p214 = por %p212, %p213
      %p215 = scmp.ne.s32.totalorder %s207, %s209
      %p216 = scmp.eq.s32.totalorder %s31, 1
      %p217 = por %p215, %p216
      %p218 = scmp.ne.s32.totalorder %s209, %s210
      %p219 = scmp.eq.s32.totalorder %s31, 0
      %p220 = por %p218, %p219
      %p221 = scmp.ne.s32.totalorder %s209, %s210
      %p222 = scmp.eq.s32.totalorder %s32, 1
      %p223 = por %p221, %p222
      %p225 = scmp.ne.s32.totalorder %s210, %s224
      %p226 = scmp.eq.s32.totalorder %s32, 0
      %p227 = por %p225, %p226
      %s229 = sadd.s32 %s228, 1
      %p232 = scmp.eq.s32.totalorder %s26, 1
      %p233 = scmp.ne.s32.totalorder %s228, %s230
      %p234 = scmp.eq.s32.totalorder %s26, 0
      %p235 = por %p233, %p234
      %p236 = scmp.ne.s32.totalorder %s228, %s230
      %p237 = scmp.eq.s32.totalorder %s31, 1
      %p238 = por %p236, %p237
      %p239 = scmp.ne.s32.totalorder %s230, %s231
      %p240 = scmp.eq.s32.totalorder %s31, 0
      %p241 = por %p239, %p240
      %p242 = scmp.ne.s32.totalorder %s230, %s231
      %p243 = scmp.eq.s32.totalorder %s32, 1
      %p244 = por %p242, %p243
      %p246 = scmp.ne.s32.totalorder %s231, %s245
      %p247 = scmp.eq.s32.totalorder %s32, 0
      %p248 = por %p246, %p247
      %s250 = sadd.s32 %s249, 1
      %p253 = scmp.eq.s32.totalorder %s26, 1
      %p254 = scmp.ne.s32.totalorder %s249, %s251
      %p255 = scmp.eq.s32.totalorder %s26, 0
      %p256 = por %p254, %p255
      %p257 = scmp.ne.s32.totalorder %s249, %s251
      %p258 = scmp.eq.s32.totalorder %s31, 1
      %p259 = por %p257, %p258
      %p260 = scmp.ne.s32.totalorder %s251, %s252
      %p261 = scmp.eq.s32.totalorder %s31, 0
      %p262 = por %p260, %p261
      %p263 = scmp.ne.s32.totalorder %s251, %s252
      %p264 = scmp.eq.s32.totalorder %s32, 1
      %p265 = por %p263, %p264
      %p267 = scmp.ne.s32.totalorder %s252, %s266
      %p268 = scmp.eq.s32.totalorder %s32, 0
      %p269 = por %p267, %p268
      %s271 = sadd.s32 %s270, 1
      %p274 = scmp.eq.s32.totalorder %s26, 1
      %p275 = scmp.ne.s32.totalorder %s270, %s272
      %p276 = scmp.eq.s32.totalorder %s26, 0
      %p277 = por %p275, %p276
      %p278 = scmp.ne.s32.totalorder %s270, %s272
      %p279 = scmp.eq.s32.totalorder %s31, 1
      %p280 = por %p278, %p279
      %p281 = scmp.ne.s32.totalorder %s272, %s273
      %p282 = scmp.eq.s32.totalorder %s31, 0
      %p283 = por %p281, %p282
      %p284 = scmp.ne.s32.totalorder %s272, %s273
      %p285 = scmp.eq.s32.totalorder %s32, 1
      %p286 = por %p284, %p285
      %p288 = scmp.ne.s32.totalorder %s273, %s287
      %p289 = scmp.eq.s32.totalorder %s32, 0
      %p290 = por %p288, %p289
      %s291 = ssub.s32 %s26, %s33
      %p292 = scmp.eq.s32.totalorder %s291, 0
      %s294 = sadd.s32 %s293, 1
      %s295 = scalar_select %p292, %s293, %s294
      %p298 = pneg %p292
      %p299 = scmp.eq.s32.totalorder %s26, 1
      %p300 = por %p298, %p299
      %p301 = scmp.ne.s32.totalorder %s293, %s296
      %p302 = scmp.eq.s32.totalorder %s26, 0
      %p303 = por %p301, %p302
      %p304 = scmp.ne.s32.totalorder %s293, %s296
      %p305 = scmp.eq.s32.totalorder %s31, 1
      %p306 = por %p304, %p305
      %p307 = scmp.ne.s32.totalorder %s296, %s297
      %p308 = scmp.eq.s32.totalorder %s31, 0
      %p309 = por %p307, %p308
      %p310 = scmp.ne.s32.totalorder %s296, %s297
      %p311 = scmp.eq.s32.totalorder %s32, 1
      %p312 = por %p310, %p311
      %p314 = scmp.ne.s32.totalorder %s297, %s313
      %p315 = scmp.eq.s32.totalorder %s32, 0
      %p316 = por %p314, %p315
      %s317 = ssub.s32 %s26, %s33
      %p318 = scmp.eq.s32.totalorder %s317, 0
      %s320 = sadd.s32 %s319, 1
      %s321 = scalar_select %p318, %s319, %s320
      %p324 = pneg %p318
      %p325 = scmp.eq.s32.totalorder %s26, 1
      %p326 = por %p324, %p325
      %p327 = scmp.ne.s32.totalorder %s319, %s322
      %p328 = scmp.eq.s32.totalorder %s26, 0
      %p329 = por %p327, %p328
      %p330 = scmp.ne.s32.totalorder %s319, %s322
      %p331 = scmp.eq.s32.totalorder %s31, 1
      %p332 = por %p330, %p331
      %p333 = scmp.ne.s32.totalorder %s322, %s323
      %p334 = scmp.eq.s32.totalorder %s31, 0
      %p335 = por %p333, %p334
      %p336 = scmp.ne.s32.totalorder %s322, %s323
      %p337 = scmp.eq.s32.totalorder %s32, 1
      %p338 = por %p336, %p337
      %p340 = scmp.ne.s32.totalorder %s323, %s339
      %p341 = scmp.eq.s32.totalorder %s32, 0
      %p342 = por %p340, %p341
      %p343 = scmp.le.s32.totalorder 1, %s26
      %p344 = scmp.lt.s32.totalorder %s26, 3
      %p345 = pnand %p343, %p344
      %p346 = pneg %p345
      // Predicated region
      $region9: #{tpu_custom_call.1} parent=5 // pred_check
        _
      $region10: #{tpu_custom_call.1} parent=5 // pred_check_branch
        %348 = sbr.rel (%p345) target = $region12
      $region11: #{tpu_custom_call.1} parent=5 // pred_region
        %s349 = ssub.s32 %s26, 1
        // Predicated region
        $region13: #{tpu_custom_call.1} parent=11 // pred_check
          %p350 = pneg %p73
        $region14: #{tpu_custom_call.1} parent=11 // pred_check_branch
          %352 = sbr.rel (%p350) target = $region16
        $region15: #{tpu_custom_call.1} parent=11 // pred_region
          %s354 = ssub.s32 2048, 2048
          %355 = vsyncadd [#allocation3], %s354
          %s356 = sshll.u32 [#allocation2], 4
          %s357 = int_to_ptr.vmem [resolvable:$true] %s356
          %362 = dma.hbm_to_vmem [thread:$0]  %s1, 2048, %s357, [#allocation3], 256, 256, 16
        $region16: #{tpu_custom_call.1} parent=11 // pred_fallthru
          _
        // Predicated region
        $region17: #{tpu_custom_call.1} parent=11 // pred_check
          %p363 = pneg %p94
        $region18: #{tpu_custom_call.1} parent=11 // pred_check_branch
          %365 = sbr.rel (%p363) target = $region20
        $region19: #{tpu_custom_call.1} parent=11 // pred_region
          %s367 = ssub.s32 2048, 2048
          %368 = vsyncadd [#allocation6], %s367
          %s369 = sshll.u32 [#allocation5], 4
          %s370 = int_to_ptr.vmem [resolvable:$true] %s369
          %375 = dma.hbm_to_vmem [thread:$0]  %s2, 2048, %s370, [#allocation6], 128, 128, 8
        $region20: #{tpu_custom_call.1} parent=11 // pred_fallthru
          _
        // Predicated region
        $region21: #{tpu_custom_call.1} parent=11 // pred_check
          %p376 = pneg %p115
        $region22: #{tpu_custom_call.1} parent=11 // pred_check_branch
          %378 = sbr.rel (%p376) target = $region24
        $region23: #{tpu_custom_call.1} parent=11 // pred_region
          _
        $region24: #{tpu_custom_call.1} parent=11 // pred_fallthru
          _
        // Predicated region
        $region25: #{tpu_custom_call.1} parent=11 // pred_check
          %p379 = pneg %p136
        $region26: #{tpu_custom_call.1} parent=11 // pred_check_branch
          %381 = sbr.rel (%p379) target = $region28
        $region27: #{tpu_custom_call.1} parent=11 // pred_region
          _
        $region28: #{tpu_custom_call.1} parent=11 // pred_fallthru
          _
        // Predicated region
        $region29: #{tpu_custom_call.1} parent=11 // pred_check
          %p382 = pneg %p157
        $region30: #{tpu_custom_call.1} parent=11 // pred_check_branch
          %384 = sbr.rel (%p382) target = $region32
        $region31: #{tpu_custom_call.1} parent=11 // pred_region
          %s386 = ssub.s32 2048, 2048
          %387 = vsyncadd [#allocation6], %s386
          %s388 = sshll.u32 [#allocation7], 4
          %s389 = int_to_ptr.vmem [resolvable:$true] %s388
          %394 = dma.hbm_to_vmem [thread:$0]  %s5, 2048, %s389, [#allocation6], 128, 128, 8
        $region32: #{tpu_custom_call.1} parent=11 // pred_fallthru
          _
        // Predicated region
        $region33: #{tpu_custom_call.1} parent=11 // pred_check
          %p395 = pneg %p178
        $region34: #{tpu_custom_call.1} parent=11 // pred_check_branch
          %397 = sbr.rel (%p395) target = $region36
        $region35: #{tpu_custom_call.1} parent=11 // pred_region
          _
        $region36: #{tpu_custom_call.1} parent=11 // pred_fallthru
          _
        // Predicated region
        $region37: #{tpu_custom_call.1} parent=11 // pred_check
          %p398 = pneg %p199
        $region38: #{tpu_custom_call.1} parent=11 // pred_check_branch
          %400 = sbr.rel (%p398) target = $region40
        $region39: #{tpu_custom_call.1} parent=11 // pred_region
          _
        $region40: #{tpu_custom_call.1} parent=11 // pred_fallthru
          _
        // Predicated region
        $region41: #{tpu_custom_call.1} parent=11 // pred_check
          %p401 = pneg %p220
        $region42: #{tpu_custom_call.1} parent=11 // pred_check_branch
          %403 = sbr.rel (%p401) target = $region44
        $region43: #{tpu_custom_call.1} parent=11 // pred_region
          %s405 = ssub.s32 2048, 2048
          %406 = vsyncadd [#allocation9], %s405
          %s407 = sshll.u32 [#allocation8], 4
          %s408 = int_to_ptr.vmem [resolvable:$true] %s407
          %413 = dma.hbm_to_vmem [thread:$0]  %s8, 2048, %s408, [#allocation9], 128, 128, 8
        $region44: #{tpu_custom_call.1} parent=11 // pred_fallthru
          _
        // Predicated region
        $region45: #{tpu_custom_call.1} parent=11 // pred_check
          %p414 = pneg %p241
        $region46: #{tpu_custom_call.1} parent=11 // pred_check_branch
          %416 = sbr.rel (%p414) target = $region48
        $region47: #{tpu_custom_call.1} parent=11 // pred_region
          _
        $region48: #{tpu_custom_call.1} parent=11 // pred_fallthru
          _
        // Predicated region
        $region49: #{tpu_custom_call.1} parent=11 // pred_check
          %p417 = pneg %p262
        $region50: #{tpu_custom_call.1} parent=11 // pred_check_branch
          %419 = sbr.rel (%p417) target = $region52
        $region51: #{tpu_custom_call.1} parent=11 // pred_region
          %s421 = ssub.s32 2048, 2048
          %422 = vsyncadd [#allocation9], %s421
          %s423 = sshll.u32 [#allocation10], 4
          %s424 = int_to_ptr.vmem [resolvable:$true] %s423
          %429 = dma.hbm_to_vmem [thread:$0]  %s10, 2048, %s424, [#allocation9], 128, 128, 8
        $region52: #{tpu_custom_call.1} parent=11 // pred_fallthru
          _
        // Predicated region
        $region53: #{tpu_custom_call.1} parent=11 // pred_check
          %p430 = pneg %p283
        $region54: #{tpu_custom_call.1} parent=11 // pred_check_branch
          %432 = sbr.rel (%p430) target = $region56
        $region55: #{tpu_custom_call.1} parent=11 // pred_region
          _
        $region56: #{tpu_custom_call.1} parent=11 // pred_fallthru
          _
      $region12: #{tpu_custom_call.1} parent=5 // pred_fallthru
        _
      %p433 = scmp.lt.s32.totalorder %s26, 2
      // Predicated region
      $region57: #{tpu_custom_call.1} parent=5 // pred_check
        %p434 = pneg %p433
      $region58: #{tpu_custom_call.1} parent=5 // pred_check_branch
        %436 = sbr.rel (%p434) target = $region60
      $region59: #{tpu_custom_call.1} parent=5 // pred_region
        // Predicated region
        $region61: #{tpu_custom_call.1} parent=59 // pred_check
          %p437 = pneg %p46
        $region62: #{tpu_custom_call.1} parent=59 // pred_check_branch
          %439 = sbr.rel (%p437) target = $region64
        $region63: #{tpu_custom_call.1} parent=59 // pred_region
          %p440 = scmp.lt.s32.totalorder %s26, 1
          %s441 = scalar_select %p440, %s26, 1
          %s442 = smul.addr %s441, 3
          %s443 = smul.addr %s442, 8
          %s444 = scalar_lea.vmem %s0, %s443
        $region64: #{tpu_custom_call.1} parent=59 // pred_fallthru
          _
      $region60: #{tpu_custom_call.1} parent=5 // pred_fallthru
        _
      %p445 = scmp.le.s32.totalorder 1, %s26
      %p446 = scmp.lt.s32.totalorder %s26, 3
      %p447 = pnand %p445, %p446
      %p448 = pneg %p447
      // Predicated region
      $region65: #{tpu_custom_call.1} parent=5 // pred_check
        _
      $region66: #{tpu_custom_call.1} parent=5 // pred_check_branch
        %450 = sbr.rel (%p447) target = $region68
      $region67: #{tpu_custom_call.1} parent=5 // pred_region
        %s451 = ssub.s32 %s26, 1
        // Predicated region
        $region69: #{tpu_custom_call.1} parent=67 // pred_check
          %p452 = pneg %p73
        $region70: #{tpu_custom_call.1} parent=67 // pred_check_branch
          %454 = sbr.rel (%p452) target = $region72
        $region71: #{tpu_custom_call.1} parent=67 // pred_region
          %455 = dma.done [#allocation3], 2048
        $region72: #{tpu_custom_call.1} parent=67 // pred_fallthru
          _
        // Predicated region
        $region73: #{tpu_custom_call.1} parent=67 // pred_check
          %p456 = pneg %p94
        $region74: #{tpu_custom_call.1} parent=67 // pred_check_branch
          %458 = sbr.rel (%p456) target = $region76
        $region75: #{tpu_custom_call.1} parent=67 // pred_region
          %459 = dma.done [#allocation6], 2048
        $region76: #{tpu_custom_call.1} parent=67 // pred_fallthru
          _
        // Predicated region
        $region77: #{tpu_custom_call.1} parent=67 // pred_check
          %p460 = pneg %p157
        $region78: #{tpu_custom_call.1} parent=67 // pred_check_branch
          %462 = sbr.rel (%p460) target = $region80
        $region79: #{tpu_custom_call.1} parent=67 // pred_region
          %463 = dma.done [#allocation6], 2048
        $region80: #{tpu_custom_call.1} parent=67 // pred_fallthru
          _
        // Predicated region
        $region81: #{tpu_custom_call.1} parent=67 // pred_check
          %p464 = pneg %p220
        $region82: #{tpu_custom_call.1} parent=67 // pred_check_branch
          %466 = sbr.rel (%p464) target = $region84
        $region83: #{tpu_custom_call.1} parent=67 // pred_region
          %467 = dma.done [#allocation9], 2048
        $region84: #{tpu_custom_call.1} parent=67 // pred_fallthru
          _
        // Predicated region
        $region85: #{tpu_custom_call.1} parent=67 // pred_check
          %p468 = pneg %p262
        $region86: #{tpu_custom_call.1} parent=67 // pred_check_branch
          %470 = sbr.rel (%p468) target = $region88
        $region87: #{tpu_custom_call.1} parent=67 // pred_region
          %471 = dma.done [#allocation9], 2048
        $region88: #{tpu_custom_call.1} parent=67 // pred_fallthru
          _
        %p472 = scmp.lt.s32.totalorder %s31, 1
        %s473 = scalar_select %p472, %s31, 1
        %s474 = smul.addr %s473, 3
        %s475 = smul.addr %s474, 8
        %s476 = scalar_lea.vmem %s0, %s475
        %p477 = pneg %p52
        %p478 = pneg %p49
        %p479 = pneg %p73
        %p480 = pneg %p70
        %p481 = pneg %p94
        %p482 = pneg %p91
        %p483 = pneg %p115
        %p484 = pneg %p112
        %p485 = pneg %p136
        %p486 = pneg %p133
        %p487 = pneg %p157
        %p488 = pneg %p154
        %p489 = pneg %p178
        %p490 = pneg %p175
        %p491 = pneg %p199
        %p492 = pneg %p196
        %p493 = pneg %p220
        %p494 = pneg %p217
        %p495 = pneg %p241
        %p496 = pneg %p238
        %p497 = pneg %p262
        %p498 = pneg %p259
        %p499 = pneg %p283
        %p500 = pneg %p280
        %p501 = pneg %p309
        %p502 = pneg %p306
        %p503 = scmp.lt.s32.totalorder %s31, 1
        %s504 = scalar_select %p503, %s31, 1
        %s505 = smul.addr %s504, 3
        %s506 = smul.addr %s505, 8
        %s507 = scalar_lea.vmem %s12, %s506
        %p508 = pneg %p335
        %p509 = pneg %p332
        %s510 = sand.u32 %s322, 1
        %s511 = scalar_lea.sflag [#allocation4], %s510
        %s512 = sand.u32 %s322, 1
        %s513 = scalar_lea.vmem [#allocation11], %s512
        %p514 = scmp.lt.s32.totalorder %s31, 1
        %s515 = scalar_select %p514, %s31, 1
        %s516 = smul.addr %s515, 3
        %s517 = smul.addr %s516, 8
        %s518 = scalar_lea.vmem %s0, %s517
        %p519 = scmp.lt.s32.totalorder %s31, 1
        %s520 = scalar_select %p519, %s31, 1
        %s521 = smul.addr %s520, 3
        %s522 = smul.addr %s521, 8
        %s523 = scalar_lea.vmem %s12, %s522
        %v524 = vld [vmem:[%s518] sm:$0xff]
        %v525 = vld [vmem:[%s518 + $0x8] sm:$0xff]
        %v526 = vld [vmem:[%s518 + $0x10] sm:$0x1]
        %v527 = vld [vmem:[#allocation2] sm:$0xff]
        %v528 = vld [vmem:[#allocation2 + $0x8] sm:$0xff]
        %v529 = vld [vmem:[#allocation2 + $0x10] sm:$0xff]
        %v530 = vld [vmem:[#allocation2 + $0x18] sm:$0xff]
        %v531 = vld [vmem:[%s518 + $0x1] sm:$0xff]
        %v532 = vld [vmem:[%s518 + $0x9] sm:$0xff]
        %v533 = vld [vmem:[%s518 + $0x11] sm:$0x1]
        %v534 = vld [vmem:[#allocation2 + $0x20] sm:$0xff]
        %v535 = vld [vmem:[#allocation2 + $0x28] sm:$0xff]
        %v536 = vld [vmem:[#allocation2 + $0x30] sm:$0xff]
        %v537 = vld [vmem:[#allocation2 + $0x38] sm:$0xff]
        %vm538 = vcmask 130048
        %v540 = vsel %vm538, %v531, 0
        %v543 = vsel %vm538, %v532, 0
        %v546 = vsel %vm538, %v533, 0
        %548 = vmatprep.subr.mxu0 %v535
        %549 = vmatpush1.msra.mxu0 %v534
        %550 = vmatprep.subr.mxu0 %v537
        %551 = vmatpush1.msra.mxu0 %v536
        %552 = vmatprep.subr.mxu0 0.0
        %553 = vmatpush1.msra.mxu0 0.0
        %554 = vmatprep.subr.mxu0 0.0
        %555 = vmatpush1.msra.mxu0 0.0
        %556 = vmatprep.subr.mxu0 0.0
        %557 = vmatpush1.msra.mxu0 0.0
        %558 = vmatprep.subr.mxu0 0.0
        %559 = vmatpush1.msra.mxu0 0.0
        %560 = vmatprep.subr.mxu0 0.0
        %561 = vmatpush1.msra.mxu0 0.0
        %562 = vmatprep.subr.mxu0 0.0
        %563 = vmatpush1.msra.mxu0 0.0
        %564 = vmatprep.subr.mxu0 0.0
        %565 = vmatpush1.msra.mxu0 0.0
        %566 = vmatprep.subr.mxu0 0.0
        %567 = vmatpush1.msra.mxu0 0.0
        %568 = vmatprep.subr.mxu0 0.0
        %569 = vmatpush1.msra.mxu0 0.0
        %570 = vmatprep.subr.mxu0 0.0
        %571 = vmatpush1.msra.mxu0 0.0
        %572 = vmatprep.subr.mxu0 0.0
        %573 = vmatpush1.msra.mxu0 0.0
        %574 = vmatprep.subr.mxu0 0.0
        %575 = vmatpush1.msra.mxu0 0.0
        %576 = vmatprep.subr.mxu0 0.0
        %577 = vmatpush1.msra.mxu0 0.0
        %578 = vmatprep.subr.mxu0 0.0
        %579 = vmatpush1.msra.mxu0 0.0
        %580 = vmatprep.subr.mxu0 0.0
        %581 = vmatpush1.msra.mxu0 0.0
        %582 = vmatprep.subr.mxu0 0.0
        %583 = vmatpush1.msra.mxu0 0.0
        %584 = vmatprep.subr.mxu0 0.0
        %585 = vmatpush1.msra.mxu0 0.0
        %586 = vmatprep.subr.mxu0 0.0
        %587 = vmatpush1.msra.mxu0 0.0
        %588 = vmatprep.subr.mxu0 0.0
        %589 = vmatpush1.msra.mxu0 0.0
        %590 = vmatprep.subr.mxu0 0.0
        %591 = vmatpush1.msra.mxu0 0.0
        %592 = vmatprep.subr.mxu0 0.0
        %593 = vmatpush1.msra.mxu0 0.0
        %594 = vmatprep.subr.mxu0 0.0
        %595 = vmatpush1.msra.mxu0 0.0
        %596 = vmatprep.subr.mxu0 0.0
        %597 = vmatpush1.msra.mxu0 0.0
        %598 = vmatprep.subr.mxu0 0.0
        %599 = vmatpush1.msra.mxu0 0.0
        %600 = vmatprep.subr.mxu0 0.0
        %601 = vmatpush1.msra.mxu0 0.0
        %602 = vmatprep.subr.mxu0 0.0
        %603 = vmatpush1.msra.mxu0 0.0
        %604 = vmatprep.subr.mxu0 0.0
        %605 = vmatpush1.msra.mxu0 0.0
        %606 = vmatprep.subr.mxu0 0.0
        %607 = vmatpush1.msra.mxu0 0.0
        %608 = vmatprep.subr.mxu0 0.0
        %609 = vmatpush1.msra.mxu0 0.0
        %610 = vmatprep.subr.mxu0 0.0
        %611 = vmatpush1.msra.mxu0 0.0
        %612 = vmatprep.mubr.f32.mxu0 0.0
        %613 = vmatmul.mubr.f32.gmra.mrb[0].mxu0 %v540
        %v614 = vpop.f32.mrb[0].mxu0
        %v615 = vadd.f32 0.0, %v614
        %v616 = vpop.f32.mrb[0].mxu0
        %v617 = vadd.f32 0.0, %v616
        %618 = vmatprep.mubr.f32.mxu0 0.0
        %619 = vmatmul.mubr.f32.gmra.mrb[0].mxu0 %v543
        %v620 = vpop.f32.mrb[0].mxu0
        %v621 = vadd.f32 0.0, %v620
        %v622 = vpop.f32.mrb[0].mxu0
        %v623 = vadd.f32 0.0, %v622
        %624 = vmatprep.mubr.f32.mxu0 0.0
        %625 = vmatmul.mubr.f32.gmra.mrb[0].mxu0 %v546
        %v626 = vpop.f32.mrb[0].mxu0
        %v627 = vadd.f32 0.0, %v626
        %v628 = vpop.f32.mrb[0].mxu0
        %v629 = vadd.f32 0.0, %v628
        %630 = vdwg.mxu0
        %v632 = vsel %vm538, %v524, 0
        %v635 = vsel %vm538, %v525, 0
        %v638 = vsel %vm538, %v526, 0
        %640 = vmatprep.subr.mxu0 %v528
        %641 = vmatpush1.msra.mxu0 %v527
        %642 = vmatprep.subr.mxu0 %v530
        %643 = vmatpush1.msra.mxu0 %v529
        %644 = vmatprep.subr.mxu0 0.0
        %645 = vmatpush1.msra.mxu0 0.0
        %646 = vmatprep.subr.mxu0 0.0
        %647 = vmatpush1.msra.mxu0 0.0
        %648 = vmatprep.subr.mxu0 0.0
        %649 = vmatpush1.msra.mxu0 0.0
        %650 = vmatprep.subr.mxu0 0.0
        %651 = vmatpush1.msra.mxu0 0.0
        %652 = vmatprep.subr.mxu0 0.0
        %653 = vmatpush1.msra.mxu0 0.0
        %654 = vmatprep.subr.mxu0 0.0
        %655 = vmatpush1.msra.mxu0 0.0
        %656 = vmatprep.subr.mxu0 0.0
        %657 = vmatpush1.msra.mxu0 0.0
        %658 = vmatprep.subr.mxu0 0.0
        %659 = vmatpush1.msra.mxu0 0.0
        %660 = vmatprep.subr.mxu0 0.0
        %661 = vmatpush1.msra.mxu0 0.0
        %662 = vmatprep.subr.mxu0 0.0
        %663 = vmatpush1.msra.mxu0 0.0
        %664 = vmatprep.subr.mxu0 0.0
        %665 = vmatpush1.msra.mxu0 0.0
        %666 = vmatprep.subr.mxu0 0.0
        %667 = vmatpush1.msra.mxu0 0.0
        %668 = vmatprep.subr.mxu0 0.0
        %669 = vmatpush1.msra.mxu0 0.0
        %670 = vmatprep.subr.mxu0 0.0
        %671 = vmatpush1.msra.mxu0 0.0
        %672 = vmatprep.subr.mxu0 0.0
        %673 = vmatpush1.msra.mxu0 0.0
        %674 = vmatprep.subr.mxu0 0.0
        %675 = vmatpush1.msra.mxu0 0.0
        %676 = vmatprep.subr.mxu0 0.0
        %677 = vmatpush1.msra.mxu0 0.0
        %678 = vmatprep.subr.mxu0 0.0
        %679 = vmatpush1.msra.mxu0 0.0
        %680 = vmatprep.subr.mxu0 0.0
        %681 = vmatpush1.msra.mxu0 0.0
        %682 = vmatprep.subr.mxu0 0.0
        %683 = vmatpush1.msra.mxu0 0.0
        %684 = vmatprep.subr.mxu0 0.0
        %685 = vmatpush1.msra.mxu0 0.0
        %686 = vmatprep.subr.mxu0 0.0
        %687 = vmatpush1.msra.mxu0 0.0
        %688 = vmatprep.subr.mxu0 0.0
        %689 = vmatpush1.msra.mxu0 0.0
        %690 = vmatprep.subr.mxu0 0.0
        %691 = vmatpush1.msra.mxu0 0.0
        %692 = vmatprep.subr.mxu0 0.0
        %693 = vmatpush1.msra.mxu0 0.0
        %694 = vmatprep.subr.mxu0 0.0
        %695 = vmatpush1.msra.mxu0 0.0
        %696 = vmatprep.subr.mxu0 0.0
        %697 = vmatpush1.msra.mxu0 0.0
        %698 = vmatprep.subr.mxu0 0.0
        %699 = vmatpush1.msra.mxu0 0.0
        %700 = vmatprep.subr.mxu0 0.0
        %701 = vmatpush1.msra.mxu0 0.0
        %702 = vmatprep.subr.mxu0 0.0
        %703 = vmatpush1.msra.mxu0 0.0
        %704 = vmatprep.mubr.f32.mxu0 0.0
        %705 = vmatmul.mubr.f32.gmra.mrb[0].mxu0 %v632
        %v706 = vpop.f32.mrb[0].mxu0
        %v707 = vadd.f32 %v615, %v706
        %v708 = vpop.f32.mrb[0].mxu0
        %v709 = vadd.f32 %v617, %v708
        %710 = vmatprep.mubr.f32.mxu0 0.0
        %711 = vmatmul.mubr.f32.gmra.mrb[0].mxu0 %v635
        %v712 = vpop.f32.mrb[0].mxu0
        %v713 = vadd.f32 %v621, %v712
        %v714 = vpop.f32.mrb[0].mxu0
        %v715 = vadd.f32 %v623, %v714
        %716 = vmatprep.mubr.f32.mxu0 0.0
        %717 = vmatmul.mubr.f32.gmra.mrb[0].mxu0 %v638
        %v718 = vpop.f32.mrb[0].mxu0
        %v719 = vadd.f32 %v627, %v718
        %v720 = vpop.f32.mrb[0].mxu0
        %v721 = vadd.f32 %v629, %v720
        %722 = vdwg.mxu0
        %v723 = vld [vmem:[%s518 + $0x2] sm:$0xff]
        %v724 = vld [vmem:[%s518 + $0xa] sm:$0xff]
        %v725 = vld [vmem:[%s518 + $0x12] sm:$0x1]
        %v726 = vld [vmem:[#allocation2 + $0x40] sm:$0xff]
        %v727 = vld [vmem:[#allocation2 + $0x48] sm:$0xff]
        %v728 = vld [vmem:[#allocation2 + $0x50] sm:$0xff]
        %v729 = vld [vmem:[#allocation2 + $0x58] sm:$0xff]
        %v731 = vsel %vm538, %v723, 0
        %v734 = vsel %vm538, %v724, 0
        %v737 = vsel %vm538, %v725, 0
        %739 = vmatprep.subr.mxu0 %v727
        %740 = vmatpush1.msra.mxu0 %v726
        %741 = vmatprep.subr.mxu0 %v729
        %742 = vmatpush1.msra.mxu0 %v728
        %743 = vmatprep.subr.mxu0 0.0
        %744 = vmatpush1.msra.mxu0 0.0
        %745 = vmatprep.subr.mxu0 0.0
        %746 = vmatpush1.msra.mxu0 0.0
        %747 = vmatprep.subr.mxu0 0.0
        %748 = vmatpush1.msra.mxu0 0.0
        %749 = vmatprep.subr.mxu0 0.0
        %750 = vmatpush1.msra.mxu0 0.0
        %751 = vmatprep.subr.mxu0 0.0
        %752 = vmatpush1.msra.mxu0 0.0
        %753 = vmatprep.subr.mxu0 0.0
        %754 = vmatpush1.msra.mxu0 0.0
        %755 = vmatprep.subr.mxu0 0.0
        %756 = vmatpush1.msra.mxu0 0.0
        %757 = vmatprep.subr.mxu0 0.0
        %758 = vmatpush1.msra.mxu0 0.0
        %759 = vmatprep.subr.mxu0 0.0
        %760 = vmatpush1.msra.mxu0 0.0
        %761 = vmatprep.subr.mxu0 0.0
        %762 = vmatpush1.msra.mxu0 0.0
        %763 = vmatprep.subr.mxu0 0.0
        %764 = vmatpush1.msra.mxu0 0.0
        %765 = vmatprep.subr.mxu0 0.0
        %766 = vmatpush1.msra.mxu0 0.0
        %767 = vmatprep.subr.mxu0 0.0
        %768 = vmatpush1.msra.mxu0 0.0
        %769 = vmatprep.subr.mxu0 0.0
        %770 = vmatpush1.msra.mxu0 0.0
        %771 = vmatprep.subr.mxu0 0.0
        %772 = vmatpush1.msra.mxu0 0.0
        %773 = vmatprep.subr.mxu0 0.0
        %774 = vmatpush1.msra.mxu0 0.0
        %775 = vmatprep.subr.mxu0 0.0
        %776 = vmatpush1.msra.mxu0 0.0
        %777 = vmatprep.subr.mxu0 0.0
        %778 = vmatpush1.msra.mxu0 0.0
        %779 = vmatprep.subr.mxu0 0.0
        %780 = vmatpush1.msra.mxu0 0.0
        %781 = vmatprep.subr.mxu0 0.0
        %782 = vmatpush1.msra.mxu0 0.0
        %783 = vmatprep.subr.mxu0 0.0
        %784 = vmatpush1.msra.mxu0 0.0
        %785 = vmatprep.subr.mxu0 0.0
        %786 = vmatpush1.msra.mxu0 0.0
        %787 = vmatprep.subr.mxu0 0.0
        %788 = vmatpush1.msra.mxu0 0.0
        %789 = vmatprep.subr.mxu0 0.0
        %790 = vmatpush1.msra.mxu0 0.0
        %791 = vmatprep.subr.mxu0 0.0
        %792 = vmatpush1.msra.mxu0 0.0
        %793 = vmatprep.subr.mxu0 0.0
        %794 = vmatpush1.msra.mxu0 0.0
        %795 = vmatprep.subr.mxu0 0.0
        %796 = vmatpush1.msra.mxu0 0.0
        %797 = vmatprep.subr.mxu0 0.0
        %798 = vmatpush1.msra.mxu0 0.0
        %799 = vmatprep.subr.mxu0 0.0
        %800 = vmatpush1.msra.mxu0 0.0
        %801 = vmatprep.subr.mxu0 0.0
        %802 = vmatpush1.msra.mxu0 0.0
        %803 = vmatprep.mubr.f32.mxu0 0.0
        %804 = vmatmul.mubr.f32.gmra.mrb[0].mxu0 %v731
        %v805 = vpop.f32.mrb[0].mxu0
        %v806 = vadd.f32 0.0, %v805
        %v807 = vpop.f32.mrb[0].mxu0
        %v808 = vadd.f32 0.0, %v807
        %809 = vmatprep.mubr.f32.mxu0 0.0
        %810 = vmatmul.mubr.f32.gmra.mrb[0].mxu0 %v734
        %v811 = vpop.f32.mrb[0].mxu0
        %v812 = vadd.f32 0.0, %v811
        %v813 = vpop.f32.mrb[0].mxu0
        %v814 = vadd.f32 0.0, %v813
        %815 = vmatprep.mubr.f32.mxu0 0.0
        %816 = vmatmul.mubr.f32.gmra.mrb[0].mxu0 %v737
        %v817 = vpop.f32.mrb[0].mxu0
        %v818 = vadd.f32 0.0, %v817
        %v819 = vpop.f32.mrb[0].mxu0
        %v820 = vadd.f32 0.0, %v819
        %821 = vdwg.mxu0
        %v822 = vadd.f32 %v707, %v806
        %v823 = vadd.f32 %v709, %v808
        %v824 = vadd.f32 %v713, %v812
        %v825 = vadd.f32 %v715, %v814
        %v826 = vadd.f32 %v719, %v818
        %v827 = vadd.f32 %v721, %v820
        %v828 = vld [vmem:[%s518 + $0x3] sm:$0xff]
        %v829 = vld [vmem:[%s518 + $0xb] sm:$0xff]
        %v830 = vld [vmem:[%s518 + $0x13] sm:$0x1]
        %v831 = vld [vmem:[#allocation2 + $0x60] sm:$0xff]
        %v832 = vld [vmem:[#allocation2 + $0x68] sm:$0xff]
        %v833 = vld [vmem:[#allocation2 + $0x70] sm:$0xff]
        %v834 = vld [vmem:[#allocation2 + $0x78] sm:$0xff]
        %v836 = vsel %vm538, %v828, 0
        %v839 = vsel %vm538, %v829, 0
        %v842 = vsel %vm538, %v830, 0
        %844 = vmatprep.subr.mxu0 %v832
        %845 = vmatpush1.msra.mxu0 %v831
        %846 = vmatprep.subr.mxu0 %v834
        %847 = vmatpush1.msra.mxu0 %v833
        %848 = vmatprep.subr.mxu0 0.0
        %849 = vmatpush1.msra.mxu0 0.0
        %850 = vmatprep.subr.mxu0 0.0
        %851 = vmatpush1.msra.mxu0 0.0
        %852 = vmatprep.subr.mxu0 0.0
        %853 = vmatpush1.msra.mxu0 0.0
        %854 = vmatprep.subr.mxu0 0.0
        %855 = vmatpush1.msra.mxu0 0.0
        %856 = vmatprep.subr.mxu0 0.0
        %857 = vmatpush1.msra.mxu0 0.0
        %858 = vmatprep.subr.mxu0 0.0
        %859 = vmatpush1.msra.mxu0 0.0
        %860 = vmatprep.subr.mxu0 0.0
        %861 = vmatpush1.msra.mxu0 0.0
        %862 = vmatprep.subr.mxu0 0.0
        %863 = vmatpush1.msra.mxu0 0.0
        %864 = vmatprep.subr.mxu0 0.0
        %865 = vmatpush1.msra.mxu0 0.0
        %866 = vmatprep.subr.mxu0 0.0
        %867 = vmatpush1.msra.mxu0 0.0
        %868 = vmatprep.subr.mxu0 0.0
        %869 = vmatpush1.msra.mxu0 0.0
        %870 = vmatprep.subr.mxu0 0.0
        %871 = vmatpush1.msra.mxu0 0.0
        %872 = vmatprep.subr.mxu0 0.0
        %873 = vmatpush1.msra.mxu0 0.0
        %874 = vmatprep.subr.mxu0 0.0
        %875 = vmatpush1.msra.mxu0 0.0
        %876 = vmatprep.subr.mxu0 0.0
        %877 = vmatpush1.msra.mxu0 0.0
        %878 = vmatprep.subr.mxu0 0.0
        %879 = vmatpush1.msra.mxu0 0.0
        %880 = vmatprep.subr.mxu0 0.0
        %881 = vmatpush1.msra.mxu0 0.0
        %882 = vmatprep.subr.mxu0 0.0
        %883 = vmatpush1.msra.mxu0 0.0
        %884 = vmatprep.subr.mxu0 0.0
        %885 = vmatpush1.msra.mxu0 0.0
        %886 = vmatprep.subr.mxu0 0.0
        %887 = vmatpush1.msra.mxu0 0.0
        %888 = vmatprep.subr.mxu0 0.0
        %889 = vmatpush1.msra.mxu0 0.0
        %890 = vmatprep.subr.mxu0 0.0
        %891 = vmatpush1.msra.mxu0 0.0
        %892 = vmatprep.subr.mxu0 0.0
        %893 = vmatpush1.msra.mxu0 0.0
        %894 = vmatprep.subr.mxu0 0.0
        %895 = vmatpush1.msra.mxu0 0.0
        %896 = vmatprep.subr.mxu0 0.0
        %897 = vmatpush1.msra.mxu0 0.0
        %898 = vmatprep.subr.mxu0 0.0
        %899 = vmatpush1.msra.mxu0 0.0
        %900 = vmatprep.subr.mxu0 0.0
        %901 = vmatpush1.msra.mxu0 0.0
        %902 = vmatprep.subr.mxu0 0.0
        %903 = vmatpush1.msra.mxu0 0.0
        %904 = vmatprep.subr.mxu0 0.0
        %905 = vmatpush1.msra.mxu0 0.0
        %906 = vmatprep.subr.mxu0 0.0
        %907 = vmatpush1.msra.mxu0 0.0
        %908 = vmatprep.mubr.f32.mxu0 0.0
        %909 = vmatmul.mubr.f32.gmra.mrb[0].mxu0 %v836
        %v910 = vpop.f32.mrb[0].mxu0
        %v911 = vadd.f32 0.0, %v910
        %v912 = vpop.f32.mrb[0].mxu0
        %v913 = vadd.f32 0.0, %v912
        %914 = vmatprep.mubr.f32.mxu0 0.0
        %915 = vmatmul.mubr.f32.gmra.mrb[0].mxu0 %v839
        %v916 = vpop.f32.mrb[0].mxu0
        %v917 = vadd.f32 0.0, %v916
        %v918 = vpop.f32.mrb[0].mxu0
        %v919 = vadd.f32 0.0, %v918
        %920 = vmatprep.mubr.f32.mxu0 0.0
        %921 = vmatmul.mubr.f32.gmra.mrb[0].mxu0 %v842
        %v922 = vpop.f32.mrb[0].mxu0
        %v923 = vadd.f32 0.0, %v922
        %v924 = vpop.f32.mrb[0].mxu0
        %v925 = vadd.f32 0.0, %v924
        %926 = vdwg.mxu0
        %v927 = vadd.f32 %v822, %v911
        %v928 = vadd.f32 %v823, %v913
        %v929 = vadd.f32 %v824, %v917
        %v930 = vadd.f32 %v825, %v919
        %v931 = vadd.f32 %v826, %v923
        %v932 = vadd.f32 %v827, %v925
        %v933 = vmul.f32 %v927, %v927
        %v934 = vmul.f32 %v929, %v929
        %v935 = vmul.f32 %v931, %v931
        %v936 = vmul.f32 %v928, %v928
        %v937 = vmul.f32 %v930, %v930
        %v938 = vmul.f32 %v932, %v932
        %v939 = vadd.f32 %v933, %v936
        %v940 = vadd.f32 %v934, %v937
        %v941 = vadd.f32 %v935, %v938
        %v942 = vld [vmem:[#allocation5] sm:$0xff]
        %v943 = vld [vmem:[#allocation5 + $0x8] sm:$0xff]
        %v944 = vld [vmem:[#allocation5 + $0x10] sm:$0xff]
        %v945 = vld [vmem:[#allocation5 + $0x18] sm:$0xff]
        %v946 = vld [vmem:[#allocation5 + $0x20] sm:$0xff]
        %v947 = vld [vmem:[#allocation5 + $0x28] sm:$0xff]
        %v948 = vld [vmem:[#allocation5 + $0x30] sm:$0xff]
        %v949 = vld [vmem:[#allocation5 + $0x38] sm:$0xff]
        %v950 = vld [vmem:[#allocation5 + $0x40] sm:$0xff]
        %v951 = vld [vmem:[#allocation5 + $0x48] sm:$0xff]
        %v952 = vld [vmem:[#allocation5 + $0x50] sm:$0xff]
        %v953 = vld [vmem:[#allocation5 + $0x58] sm:$0xff]
        %v954 = vld [vmem:[#allocation5 + $0x60] sm:$0xff]
        %v955 = vld [vmem:[#allocation5 + $0x68] sm:$0xff]
        %v956 = vld [vmem:[#allocation5 + $0x70] sm:$0xff]
        %v957 = vld [vmem:[#allocation5 + $0x78] sm:$0xff]
        %958 = vmatprep.subr.mxu0 0.0
        %959 = vmatpush1.msra.mxu0 %v942
        %960 = vmatprep.subr.mxu0 0.0
        %961 = vmatpush1.msra.mxu0 %v943
        %962 = vmatprep.subr.mxu0 0.0
        %963 = vmatpush1.msra.mxu0 %v944
        %964 = vmatprep.subr.mxu0 0.0
        %965 = vmatpush1.msra.mxu0 %v945
        %966 = vmatprep.subr.mxu0 0.0
        %967 = vmatpush1.msra.mxu0 %v946
        %968 = vmatprep.subr.mxu0 0.0
        %969 = vmatpush1.msra.mxu0 %v947
        %970 = vmatprep.subr.mxu0 0.0
        %971 = vmatpush1.msra.mxu0 %v948
        %972 = vmatprep.subr.mxu0 0.0
        %973 = vmatpush1.msra.mxu0 %v949
        %974 = vmatprep.subr.mxu0 0.0
        %975 = vmatpush1.msra.mxu0 %v950
        %976 = vmatprep.subr.mxu0 0.0
        %977 = vmatpush1.msra.mxu0 %v951
        %978 = vmatprep.subr.mxu0 0.0
        %979 = vmatpush1.msra.mxu0 %v952
        %980 = vmatprep.subr.mxu0 0.0
        %981 = vmatpush1.msra.mxu0 %v953
        %982 = vmatprep.subr.mxu0 0.0
        %983 = vmatpush1.msra.mxu0 %v954
        %984 = vmatprep.subr.mxu0 0.0
        %985 = vmatpush1.msra.mxu0 %v955
        %986 = vmatprep.subr.mxu0 0.0
        %987 = vmatpush1.msra.mxu0 %v956
        %988 = vmatprep.subr.mxu0 0.0
        %989 = vmatpush1.msra.mxu0 %v957
        %990 = vmatprep.subr.mxu0 0.0
        %991 = vmatpush1.msra.mxu0 0.0
        %992 = vmatprep.subr.mxu0 0.0
        %993 = vmatpush1.msra.mxu0 0.0
        %994 = vmatprep.subr.mxu0 0.0
        %995 = vmatpush1.msra.mxu0 0.0
        %996 = vmatprep.subr.mxu0 0.0
        %997 = vmatpush1.msra.mxu0 0.0
        %998 = vmatprep.subr.mxu0 0.0
        %999 = vmatpush1.msra.mxu0 0.0
        %1000 = vmatprep.subr.mxu0 0.0
        %1001 = vmatpush1.msra.mxu0 0.0
        %1002 = vmatprep.subr.mxu0 0.0
        %1003 = vmatpush1.msra.mxu0 0.0
        %1004 = vmatprep.subr.mxu0 0.0
        %1005 = vmatpush1.msra.mxu0 0.0
        %1006 = vmatprep.subr.mxu0 0.0
        %1007 = vmatpush1.msra.mxu0 0.0
        %1008 = vmatprep.subr.mxu0 0.0
        %1009 = vmatpush1.msra.mxu0 0.0
        %1010 = vmatprep.subr.mxu0 0.0
        %1011 = vmatpush1.msra.mxu0 0.0
        %1012 = vmatprep.subr.mxu0 0.0
        %1013 = vmatpush1.msra.mxu0 0.0
        %1014 = vmatprep.subr.mxu0 0.0
        %1015 = vmatpush1.msra.mxu0 0.0
        %1016 = vmatprep.subr.mxu0 0.0
        %1017 = vmatpush1.msra.mxu0 0.0
        %1018 = vmatprep.subr.mxu0 0.0
        %1019 = vmatpush1.msra.mxu0 0.0
        %1020 = vmatprep.subr.mxu0 0.0
        %1021 = vmatpush1.msra.mxu0 0.0
        %1022 = vmatprep.mubr.f32.mxu0 0.0
        %1023 = vmatmul.mubr.f32.gmra.mrb[0].mxu0 %v939
        %v1024 = vpop.f32.mrb[0].mxu0
        %v1025 = vadd.f32 0.0, %v1024
        %v1026 = vpop.f32.mrb[0].mxu0
        %1027 = vmatprep.mubr.f32.mxu0 0.0
        %1028 = vmatmul.mubr.f32.gmra.mrb[0].mxu0 %v940
        %v1029 = vpop.f32.mrb[0].mxu0
        %v1030 = vadd.f32 0.0, %v1029
        %v1031 = vpop.f32.mrb[0].mxu0
        %1032 = vmatprep.mubr.f32.mxu0 0.0
        %1033 = vmatmul.mubr.f32.gmra.mrb[0].mxu0 %v941
        %v1034 = vpop.f32.mrb[0].mxu0
        %v1035 = vadd.f32 0.0, %v1034
        %v1036 = vpop.f32.mrb[0].mxu0
        %1037 = vdwg.mxu0
        %v1038 = vmax.f32 %v1025, 1e-10
        %v1039 = vmax.f32 %v1030, 1e-10
        %v1040 = vmax.f32 %v1035, 1e-10
        %v1041 = vlog2.pop %v1038
        %v1042 = vmul.f32 %v1041, 0.6931472
        %v1043 = vlog2.pop %v1039
        %v1044 = vmul.f32 %v1043, 0.6931472
        %v1045 = vlog2.pop %v1040
        %v1046 = vmul.f32 %v1045, 0.6931472
        %v1047 = vmul.f32 %v1042, 0.4342945
        %v1048 = vmul.f32 %v1044, 0.4342945
        %v1049 = vmul.f32 %v1046, 0.4342945
        %v1050 = vmul.f32 %v1047, 10.0
        %v1051 = vmul.f32 %v1048, 10.0
        %v1052 = vmul.f32 %v1049, 10.0
        %v1053 = vld [vmem:[%s3] sm:$0x1]
        %v1055 = vlaneseq
        %v1056 = vshrl.u32 %v1055, 7
        %v1057 = vsub.s32 0, %v1056
        %v1058 = vrot.slane %v1053, %v1057
        %v1060 = vmul.f32 %v1050, %v1058
        %v1061 = vmul.f32 %v1051, %v1058
        %v1062 = vmul.f32 %v1052, %v1058
        %v1063 = vld [vmem:[%s4] sm:$0x1]
        %v1065 = vlaneseq
        %v1066 = vshrl.u32 %v1065, 7
        %v1067 = vsub.s32 0, %v1066
        %v1068 = vrot.slane %v1063, %v1067
        %v1070 = vadd.f32 %v1060, %v1068
        %v1071 = vadd.f32 %v1061, %v1068
        %v1072 = vadd.f32 %v1062, %v1068
        %v1073 = vld [vmem:[#allocation7] sm:$0xff]
        %v1074 = vld [vmem:[#allocation7 + $0x8] sm:$0xff]
        %v1075 = vld [vmem:[#allocation7 + $0x10] sm:$0xff]
        %v1076 = vld [vmem:[#allocation7 + $0x18] sm:$0xff]
        %v1077 = vld [vmem:[#allocation7 + $0x20] sm:$0xff]
        %v1078 = vld [vmem:[#allocation7 + $0x28] sm:$0xff]
        %v1079 = vld [vmem:[#allocation7 + $0x30] sm:$0xff]
        %v1080 = vld [vmem:[#allocation7 + $0x38] sm:$0xff]
        %v1081 = vld [vmem:[#allocation7 + $0x40] sm:$0xff]
        %v1082 = vld [vmem:[#allocation7 + $0x48] sm:$0xff]
        %v1083 = vld [vmem:[#allocation7 + $0x50] sm:$0xff]
        %v1084 = vld [vmem:[#allocation7 + $0x58] sm:$0xff]
        %v1085 = vld [vmem:[#allocation7 + $0x60] sm:$0xff]
        %v1086 = vld [vmem:[#allocation7 + $0x68] sm:$0xff]
        %v1087 = vld [vmem:[#allocation7 + $0x70] sm:$0xff]
        %v1088 = vld [vmem:[#allocation7 + $0x78] sm:$0xff]
        %v1089 = vld [vmem:[%s6] sm:$0x1]
        %v1091 = vlaneseq
        %v1092 = vshrl.u32 %v1091, 7
        %v1093 = vsub.s32 0, %v1092
        %v1094 = vrot.slane %v1089, %v1093
        %1096 = vmatprep.subr.mxu0 0.0
        %1097 = vmatpush1.msra.mxu0 %v1073
        %1098 = vmatprep.subr.mxu0 0.0
        %1099 = vmatpush1.msra.mxu0 %v1074
        %1100 = vmatprep.subr.mxu0 0.0
        %1101 = vmatpush1.msra.mxu0 %v1075
        %1102 = vmatprep.subr.mxu0 0.0
        %1103 = vmatpush1.msra.mxu0 %v1076
        %1104 = vmatprep.subr.mxu0 0.0
        %1105 = vmatpush1.msra.mxu0 %v1077
        %1106 = vmatprep.subr.mxu0 0.0
        %1107 = vmatpush1.msra.mxu0 %v1078
        %1108 = vmatprep.subr.mxu0 0.0
        %1109 = vmatpush1.msra.mxu0 %v1079
        %1110 = vmatprep.subr.mxu0 0.0
        %1111 = vmatpush1.msra.mxu0 %v1080
        %1112 = vmatprep.subr.mxu0 0.0
        %1113 = vmatpush1.msra.mxu0 %v1081
        %1114 = vmatprep.subr.mxu0 0.0
        %1115 = vmatpush1.msra.mxu0 %v1082
        %1116 = vmatprep.subr.mxu0 0.0
        %1117 = vmatpush1.msra.mxu0 %v1083
        %1118 = vmatprep.subr.mxu0 0.0
        %1119 = vmatpush1.msra.mxu0 %v1084
        %1120 = vmatprep.subr.mxu0 0.0
        %1121 = vmatpush1.msra.mxu0 %v1085
        %1122 = vmatprep.subr.mxu0 0.0
        %1123 = vmatpush1.msra.mxu0 %v1086
        %1124 = vmatprep.subr.mxu0 0.0
        %1125 = vmatpush1.msra.mxu0 %v1087
        %1126 = vmatprep.subr.mxu0 0.0
        %1127 = vmatpush1.msra.mxu0 %v1088
        %1128 = vmatprep.subr.mxu0 0.0
        %1129 = vmatpush1.msra.mxu0 0.0
        %1130 = vmatprep.subr.mxu0 0.0
        %1131 = vmatpush1.msra.mxu0 0.0
        %1132 = vmatprep.subr.mxu0 0.0
        %1133 = vmatpush1.msra.mxu0 0.0
        %1134 = vmatprep.subr.mxu0 0.0
        %1135 = vmatpush1.msra.mxu0 0.0
        %1136 = vmatprep.subr.mxu0 0.0
        %1137 = vmatpush1.msra.mxu0 0.0
        %1138 = vmatprep.subr.mxu0 0.0
        %1139 = vmatpush1.msra.mxu0 0.0
        %1140 = vmatprep.subr.mxu0 0.0
        %1141 = vmatpush1.msra.mxu0 0.0
        %1142 = vmatprep.subr.mxu0 0.0
        %1143 = vmatpush1.msra.mxu0 0.0
        %1144 = vmatprep.subr.mxu0 0.0
        %1145 = vmatpush1.msra.mxu0 0.0
        %1146 = vmatprep.subr.mxu0 0.0
        %1147 = vmatpush1.msra.mxu0 0.0
        %1148 = vmatprep.subr.mxu0 0.0
        %1149 = vmatpush1.msra.mxu0 0.0
        %1150 = vmatprep.subr.mxu0 0.0
        %1151 = vmatpush1.msra.mxu0 0.0
        %1152 = vmatprep.subr.mxu0 0.0
        %1153 = vmatpush1.msra.mxu0 0.0
        %1154 = vmatprep.subr.mxu0 0.0
        %1155 = vmatpush1.msra.mxu0 0.0
        %1156 = vmatprep.subr.mxu0 0.0
        %1157 = vmatpush1.msra.mxu0 0.0
        %1158 = vmatprep.subr.mxu0 0.0
        %1159 = vmatpush1.msra.mxu0 0.0
        %1160 = vmatprep.mubr.f32.mxu0 0.0
        %1161 = vmatmul.mubr.f32.gmra.mrb[0].mxu0 %v1070
        %v1162 = vpop.f32.mrb[0].mxu0
        %v1163 = vadd.f32 %v1094, %v1162
        %v1164 = vpop.f32.mrb[0].mxu0
        %1165 = vmatprep.mubr.f32.mxu0 0.0
        %1166 = vmatmul.mubr.f32.gmra.mrb[0].mxu0 %v1071
        %v1167 = vpop.f32.mrb[0].mxu0
        %v1168 = vadd.f32 %v1094, %v1167
        %v1169 = vpop.f32.mrb[0].mxu0
        %1170 = vmatprep.mubr.f32.mxu0 0.0
        %1171 = vmatmul.mubr.f32.gmra.mrb[0].mxu0 %v1072
        %v1172 = vpop.f32.mrb[0].mxu0
        %v1173 = vadd.f32 %v1094, %v1172
        %v1174 = vpop.f32.mrb[0].mxu0
        %1175 = vdwg.mxu0
        %v1176 = vmax.f32 %v1163, 0.0
        %v1177 = vmax.f32 %v1168, 0.0
        %v1178 = vmax.f32 %v1173, 0.0
        %v1179 = vld [vmem:[#allocation8] sm:$0xff]
        %v1180 = vld [vmem:[#allocation8 + $0x8] sm:$0xff]
        %v1181 = vld [vmem:[#allocation8 + $0x10] sm:$0xff]
        %v1182 = vld [vmem:[#allocation8 + $0x18] sm:$0xff]
        %v1183 = vld [vmem:[#allocation8 + $0x20] sm:$0xff]
        %v1184 = vld [vmem:[#allocation8 + $0x28] sm:$0xff]
        %v1185 = vld [vmem:[#allocation8 + $0x30] sm:$0xff]
        %v1186 = vld [vmem:[#allocation8 + $0x38] sm:$0xff]
        %v1187 = vld [vmem:[#allocation8 + $0x40] sm:$0xff]
        %v1188 = vld [vmem:[#allocation8 + $0x48] sm:$0xff]
        %v1189 = vld [vmem:[#allocation8 + $0x50] sm:$0xff]
        %v1190 = vld [vmem:[#allocation8 + $0x58] sm:$0xff]
        %v1191 = vld [vmem:[#allocation8 + $0x60] sm:$0xff]
        %v1192 = vld [vmem:[#allocation8 + $0x68] sm:$0xff]
        %v1193 = vld [vmem:[#allocation8 + $0x70] sm:$0xff]
        %v1194 = vld [vmem:[#allocation8 + $0x78] sm:$0xff]
        %v1195 = vld [vmem:[%s9] sm:$0x1]
        %v1197 = vlaneseq
        %v1198 = vshrl.u32 %v1197, 7
        %v1199 = vsub.s32 0, %v1198
        %v1200 = vrot.slane %v1195, %v1199
        %1202 = vmatprep.subr.mxu0 0.0
        %1203 = vmatpush1.msra.mxu0 %v1179
        %1204 = vmatprep.subr.mxu0 0.0
        %1205 = vmatpush1.msra.mxu0 %v1180
        %1206 = vmatprep.subr.mxu0 0.0
        %1207 = vmatpush1.msra.mxu0 %v1181
        %1208 = vmatprep.subr.mxu0 0.0
        %1209 = vmatpush1.msra.mxu0 %v1182
        %1210 = vmatprep.subr.mxu0 0.0
        %1211 = vmatpush1.msra.mxu0 %v1183
        %1212 = vmatprep.subr.mxu0 0.0
        %1213 = vmatpush1.msra.mxu0 %v1184
        %1214 = vmatprep.subr.mxu0 0.0
        %1215 = vmatpush1.msra.mxu0 %v1185
        %1216 = vmatprep.subr.mxu0 0.0
        %1217 = vmatpush1.msra.mxu0 %v1186
        %1218 = vmatprep.subr.mxu0 0.0
        %1219 = vmatpush1.msra.mxu0 %v1187
        %1220 = vmatprep.subr.mxu0 0.0
        %1221 = vmatpush1.msra.mxu0 %v1188
        %1222 = vmatprep.subr.mxu0 0.0
        %1223 = vmatpush1.msra.mxu0 %v1189
        %1224 = vmatprep.subr.mxu0 0.0
        %1225 = vmatpush1.msra.mxu0 %v1190
        %1226 = vmatprep.subr.mxu0 0.0
        %1227 = vmatpush1.msra.mxu0 %v1191
        %1228 = vmatprep.subr.mxu0 0.0
        %1229 = vmatpush1.msra.mxu0 %v1192
        %1230 = vmatprep.subr.mxu0 0.0
        %1231 = vmatpush1.msra.mxu0 %v1193
        %1232 = vmatprep.subr.mxu0 0.0
        %1233 = vmatpush1.msra.mxu0 %v1194
        %1234 = vmatprep.subr.mxu0 0.0
        %1235 = vmatpush1.msra.mxu0 0.0
        %1236 = vmatprep.subr.mxu0 0.0
        %1237 = vmatpush1.msra.mxu0 0.0
        %1238 = vmatprep.subr.mxu0 0.0
        %1239 = vmatpush1.msra.mxu0 0.0
        %1240 = vmatprep.subr.mxu0 0.0
        %1241 = vmatpush1.msra.mxu0 0.0
        %1242 = vmatprep.subr.mxu0 0.0
        %1243 = vmatpush1.msra.mxu0 0.0
        %1244 = vmatprep.subr.mxu0 0.0
        %1245 = vmatpush1.msra.mxu0 0.0
        %1246 = vmatprep.subr.mxu0 0.0
        %1247 = vmatpush1.msra.mxu0 0.0
        %1248 = vmatprep.subr.mxu0 0.0
        %1249 = vmatpush1.msra.mxu0 0.0
        %1250 = vmatprep.subr.mxu0 0.0
        %1251 = vmatpush1.msra.mxu0 0.0
        %1252 = vmatprep.subr.mxu0 0.0
        %1253 = vmatpush1.msra.mxu0 0.0
        %1254 = vmatprep.subr.mxu0 0.0
        %1255 = vmatpush1.msra.mxu0 0.0
        %1256 = vmatprep.subr.mxu0 0.0
        %1257 = vmatpush1.msra.mxu0 0.0
        %1258 = vmatprep.subr.mxu0 0.0
        %1259 = vmatpush1.msra.mxu0 0.0
        %1260 = vmatprep.subr.mxu0 0.0
        %1261 = vmatpush1.msra.mxu0 0.0
        %1262 = vmatprep.subr.mxu0 0.0
        %1263 = vmatpush1.msra.mxu0 0.0
        %1264 = vmatprep.subr.mxu0 0.0
        %1265 = vmatpush1.msra.mxu0 0.0
        %1266 = vmatprep.mubr.f32.mxu0 0.0
        %1267 = vmatmul.mubr.f32.gmra.mrb[0].mxu0 %v1176
        %v1268 = vpop.f32.mrb[0].mxu0
        %v1269 = vadd.f32 %v1200, %v1268
        %v1270 = vpop.f32.mrb[0].mxu0
        %1271 = vmatprep.mubr.f32.mxu0 0.0
        %1272 = vmatmul.mubr.f32.gmra.mrb[0].mxu0 %v1177
        %v1273 = vpop.f32.mrb[0].mxu0
        %v1274 = vadd.f32 %v1200, %v1273
        %v1275 = vpop.f32.mrb[0].mxu0
        %1276 = vmatprep.mubr.f32.mxu0 0.0
        %1277 = vmatmul.mubr.f32.gmra.mrb[0].mxu0 %v1178
        %v1278 = vpop.f32.mrb[0].mxu0
        %v1279 = vadd.f32 %v1200, %v1278
        %v1280 = vpop.f32.mrb[0].mxu0
        %1281 = vdwg.mxu0
        %v1282 = vmax.f32 %v1269, 0.0
        %v1283 = vmax.f32 %v1274, 0.0
        %v1284 = vmax.f32 %v1279, 0.0
        %v1285 = vld [vmem:[#allocation10] sm:$0xff]
        %v1286 = vld [vmem:[#allocation10 + $0x8] sm:$0xff]
        %v1287 = vld [vmem:[#allocation10 + $0x10] sm:$0xff]
        %v1288 = vld [vmem:[#allocation10 + $0x18] sm:$0xff]
        %v1289 = vld [vmem:[#allocation10 + $0x20] sm:$0xff]
        %v1290 = vld [vmem:[#allocation10 + $0x28] sm:$0xff]
        %v1291 = vld [vmem:[#allocation10 + $0x30] sm:$0xff]
        %v1292 = vld [vmem:[#allocation10 + $0x38] sm:$0xff]
        %v1293 = vld [vmem:[#allocation10 + $0x40] sm:$0xff]
        %v1294 = vld [vmem:[#allocation10 + $0x48] sm:$0xff]
        %v1295 = vld [vmem:[#allocation10 + $0x50] sm:$0xff]
        %v1296 = vld [vmem:[#allocation10 + $0x58] sm:$0xff]
        %v1297 = vld [vmem:[#allocation10 + $0x60] sm:$0xff]
        %v1298 = vld [vmem:[#allocation10 + $0x68] sm:$0xff]
        %v1299 = vld [vmem:[#allocation10 + $0x70] sm:$0xff]
        %v1300 = vld [vmem:[#allocation10 + $0x78] sm:$0xff]
        %v1301 = vld [vmem:[%s11] sm:$0x1]
        %v1303 = vlaneseq
        %v1304 = vshrl.u32 %v1303, 7
        %v1305 = vsub.s32 0, %v1304
        %v1306 = vrot.slane %v1301, %v1305
        %1308 = vmatprep.subr.mxu0 0.0
        %1309 = vmatpush1.msra.mxu0 %v1285
        %1310 = vmatprep.subr.mxu0 0.0
        %1311 = vmatpush1.msra.mxu0 %v1286
        %1312 = vmatprep.subr.mxu0 0.0
        %1313 = vmatpush1.msra.mxu0 %v1287
        %1314 = vmatprep.subr.mxu0 0.0
        %1315 = vmatpush1.msra.mxu0 %v1288
        %1316 = vmatprep.subr.mxu0 0.0
        %1317 = vmatpush1.msra.mxu0 %v1289
        %1318 = vmatprep.subr.mxu0 0.0
        %1319 = vmatpush1.msra.mxu0 %v1290
        %1320 = vmatprep.subr.mxu0 0.0
        %1321 = vmatpush1.msra.mxu0 %v1291
        %1322 = vmatprep.subr.mxu0 0.0
        %1323 = vmatpush1.msra.mxu0 %v1292
        %1324 = vmatprep.subr.mxu0 0.0
        %1325 = vmatpush1.msra.mxu0 %v1293
        %1326 = vmatprep.subr.mxu0 0.0
        %1327 = vmatpush1.msra.mxu0 %v1294
        %1328 = vmatprep.subr.mxu0 0.0
        %1329 = vmatpush1.msra.mxu0 %v1295
        %1330 = vmatprep.subr.mxu0 0.0
        %1331 = vmatpush1.msra.mxu0 %v1296
        %1332 = vmatprep.subr.mxu0 0.0
        %1333 = vmatpush1.msra.mxu0 %v1297
        %1334 = vmatprep.subr.mxu0 0.0
        %1335 = vmatpush1.msra.mxu0 %v1298
        %1336 = vmatprep.subr.mxu0 0.0
        %1337 = vmatpush1.msra.mxu0 %v1299
        %1338 = vmatprep.subr.mxu0 0.0
        %1339 = vmatpush1.msra.mxu0 %v1300
        %1340 = vmatprep.subr.mxu0 0.0
        %1341 = vmatpush1.msra.mxu0 0.0
        %1342 = vmatprep.subr.mxu0 0.0
        %1343 = vmatpush1.msra.mxu0 0.0
        %1344 = vmatprep.subr.mxu0 0.0
        %1345 = vmatpush1.msra.mxu0 0.0
        %1346 = vmatprep.subr.mxu0 0.0
        %1347 = vmatpush1.msra.mxu0 0.0
        %1348 = vmatprep.subr.mxu0 0.0
        %1349 = vmatpush1.msra.mxu0 0.0
        %1350 = vmatprep.subr.mxu0 0.0
        %1351 = vmatpush1.msra.mxu0 0.0
        %1352 = vmatprep.subr.mxu0 0.0
        %1353 = vmatpush1.msra.mxu0 0.0
        %1354 = vmatprep.subr.mxu0 0.0
        %1355 = vmatpush1.msra.mxu0 0.0
        %1356 = vmatprep.subr.mxu0 0.0
        %1357 = vmatpush1.msra.mxu0 0.0
        %1358 = vmatprep.subr.mxu0 0.0
        %1359 = vmatpush1.msra.mxu0 0.0
        %1360 = vmatprep.subr.mxu0 0.0
        %1361 = vmatpush1.msra.mxu0 0.0
        %1362 = vmatprep.subr.mxu0 0.0
        %1363 = vmatpush1.msra.mxu0 0.0
        %1364 = vmatprep.subr.mxu0 0.0
        %1365 = vmatpush1.msra.mxu0 0.0
        %1366 = vmatprep.subr.mxu0 0.0
        %1367 = vmatpush1.msra.mxu0 0.0
        %1368 = vmatprep.subr.mxu0 0.0
        %1369 = vmatpush1.msra.mxu0 0.0
        %1370 = vmatprep.subr.mxu0 0.0
        %1371 = vmatpush1.msra.mxu0 0.0
        %1372 = vmatprep.mubr.f32.mxu0 0.0
        %1373 = vmatmul.mubr.f32.gmra.mrb[0].mxu0 %v1282
        %v1374 = vpop.f32.mrb[0].mxu0
        %v1375 = vadd.f32 %v1306, %v1374
        %v1376 = vpop.f32.mrb[0].mxu0
        %1377 = vmatprep.mubr.f32.mxu0 0.0
        %1378 = vmatmul.mubr.f32.gmra.mrb[0].mxu0 %v1283
        %v1379 = vpop.f32.mrb[0].mxu0
        %v1380 = vadd.f32 %v1306, %v1379
        %v1381 = vpop.f32.mrb[0].mxu0
        %1382 = vmatprep.mubr.f32.mxu0 0.0
        %1383 = vmatmul.mubr.f32.gmra.mrb[0].mxu0 %v1284
        %v1384 = vpop.f32.mrb[0].mxu0
        %v1385 = vadd.f32 %v1306, %v1384
        %v1386 = vpop.f32.mrb[0].mxu0
        %1387 = vdwg.mxu0
        %1388 = vst [vmem:[%s523] sm:$0xff] %v1375
        %1389 = vst [vmem:[%s523 + $0x8] sm:$0xff] %v1380
        %1390 = vst [vmem:[%s523 + $0x10] sm:$0x1] %v1385
        %v1391 = vld [vmem:[%s7] sm:$0x1]
        %v1392 = vld [vmem:[#allocation8] sm:$0xff]
        %v1393 = vld [vmem:[#allocation8 + $0x8] sm:$0xff]
        %v1394 = vld [vmem:[#allocation8 + $0x10] sm:$0xff]
        %v1395 = vld [vmem:[#allocation8 + $0x18] sm:$0xff]
        %v1396 = vld [vmem:[#allocation8 + $0x20] sm:$0xff]
        %v1397 = vld [vmem:[#allocation8 + $0x28] sm:$0xff]
        %v1398 = vld [vmem:[#allocation8 + $0x30] sm:$0xff]
        %v1399 = vld [vmem:[#allocation8 + $0x38] sm:$0xff]
        %v1400 = vld [vmem:[#allocation8 + $0x40] sm:$0xff]
        %v1401 = vld [vmem:[#allocation8 + $0x48] sm:$0xff]
        %v1402 = vld [vmem:[#allocation8 + $0x50] sm:$0xff]
        %v1403 = vld [vmem:[#allocation8 + $0x58] sm:$0xff]
        %v1404 = vld [vmem:[#allocation8 + $0x60] sm:$0xff]
        %v1405 = vld [vmem:[#allocation8 + $0x68] sm:$0xff]
        %v1406 = vld [vmem:[#allocation8 + $0x70] sm:$0xff]
        %v1407 = vld [vmem:[#allocation8 + $0x78] sm:$0xff]
        %v1408 = vld [vmem:[%s9] sm:$0x1]
        %1409 = vmatprep.subr.mxu0 0.0
        %1410 = vmatpush1.msra.mxu0 %v1392
        %1411 = vmatprep.subr.mxu0 0.0
        %1412 = vmatpush1.msra.mxu0 %v1393
        %1413 = vmatprep.subr.mxu0 0.0
        %1414 = vmatpush1.msra.mxu0 %v1394
        %1415 = vmatprep.subr.mxu0 0.0
        %1416 = vmatpush1.msra.mxu0 %v1395
        %1417 = vmatprep.subr.mxu0 0.0
        %1418 = vmatpush1.msra.mxu0 %v1396
        %1419 = vmatprep.subr.mxu0 0.0
        %1420 = vmatpush1.msra.mxu0 %v1397
        %1421 = vmatprep.subr.mxu0 0.0
        %1422 = vmatpush1.msra.mxu0 %v1398
        %1423 = vmatprep.subr.mxu0 0.0
        %1424 = vmatpush1.msra.mxu0 %v1399
        %1425 = vmatprep.subr.mxu0 0.0
        %1426 = vmatpush1.msra.mxu0 %v1400
        %1427 = vmatprep.subr.mxu0 0.0
        %1428 = vmatpush1.msra.mxu0 %v1401
        %1429 = vmatprep.subr.mxu0 0.0
        %1430 = vmatpush1.msra.mxu0 %v1402
        %1431 = vmatprep.subr.mxu0 0.0
        %1432 = vmatpush1.msra.mxu0 %v1403
        %1433 = vmatprep.subr.mxu0 0.0
        %1434 = vmatpush1.msra.mxu0 %v1404
        %1435 = vmatprep.subr.mxu0 0.0
        %1436 = vmatpush1.msra.mxu0 %v1405
        %1437 = vmatprep.subr.mxu0 0.0
        %1438 = vmatpush1.msra.mxu0 %v1406
        %1439 = vmatprep.subr.mxu0 0.0
        %1440 = vmatpush1.msra.mxu0 %v1407
        %1441 = vmatprep.subr.mxu0 0.0
        %1442 = vmatpush1.msra.mxu0 0.0
        %1443 = vmatprep.subr.mxu0 0.0
        %1444 = vmatpush1.msra.mxu0 0.0
        %1445 = vmatprep.subr.mxu0 0.0
        %1446 = vmatpush1.msra.mxu0 0.0
        %1447 = vmatprep.subr.mxu0 0.0
        %1448 = vmatpush1.msra.mxu0 0.0
        %1449 = vmatprep.subr.mxu0 0.0
        %1450 = vmatpush1.msra.mxu0 0.0
        %1451 = vmatprep.subr.mxu0 0.0
        %1452 = vmatpush1.msra.mxu0 0.0
        %1453 = vmatprep.subr.mxu0 0.0
        %1454 = vmatpush1.msra.mxu0 0.0
        %1455 = vmatprep.subr.mxu0 0.0
        %1456 = vmatpush1.msra.mxu0 0.0
        %1457 = vmatprep.subr.mxu0 0.0
        %1458 = vmatpush1.msra.mxu0 0.0
        %1459 = vmatprep.subr.mxu0 0.0
        %1460 = vmatpush1.msra.mxu0 0.0
        %1461 = vmatprep.subr.mxu0 0.0
        %1462 = vmatpush1.msra.mxu0 0.0
        %1463 = vmatprep.subr.mxu0 0.0
        %1464 = vmatpush1.msra.mxu0 0.0
        %1465 = vmatprep.subr.mxu0 0.0
        %1466 = vmatpush1.msra.mxu0 0.0
        %1467 = vmatprep.subr.mxu0 0.0
        %1468 = vmatpush1.msra.mxu0 0.0
        %1469 = vmatprep.subr.mxu0 0.0
        %1470 = vmatpush1.msra.mxu0 0.0
        %1471 = vmatprep.subr.mxu0 0.0
        %1472 = vmatpush1.msra.mxu0 0.0
        %1473 = vmatprep.mubr.f32.mxu0 0.0
        %1474 = vmatmul.mubr.f32.gmra.mrb[0].mxu0 %v1391
        %v1475 = vpop.f32.mrb[0].mxu0
        %v1476 = vadd.f32 %v1408, %v1475
        %v1477 = vpop.f32.mrb[0].mxu0
        %1478 = vdwg.mxu0
        %v1479 = vmax.f32 %v1476, 0.0
        %v1480 = vld [vmem:[#allocation10] sm:$0xff]
        %v1481 = vld [vmem:[#allocation10 + $0x8] sm:$0xff]
        %v1482 = vld [vmem:[#allocation10 + $0x10] sm:$0xff]
        %v1483 = vld [vmem:[#allocation10 + $0x18] sm:$0xff]
        %v1484 = vld [vmem:[#allocation10 + $0x20] sm:$0xff]
        %v1485 = vld [vmem:[#allocation10 + $0x28] sm:$0xff]
        %v1486 = vld [vmem:[#allocation10 + $0x30] sm:$0xff]
        %v1487 = vld [vmem:[#allocation10 + $0x38] sm:$0xff]
        %v1488 = vld [vmem:[#allocation10 + $0x40] sm:$0xff]
        %v1489 = vld [vmem:[#allocation10 + $0x48] sm:$0xff]
        %v1490 = vld [vmem:[#allocation10 + $0x50] sm:$0xff]
        %v1491 = vld [vmem:[#allocation10 + $0x58] sm:$0xff]
        %v1492 = vld [vmem:[#allocation10 + $0x60] sm:$0xff]
        %v1493 = vld [vmem:[#allocation10 + $0x68] sm:$0xff]
        %v1494 = vld [vmem:[#allocation10 + $0x70] sm:$0xff]
        %v1495 = vld [vmem:[#allocation10 + $0x78] sm:$0xff]
        %v1496 = vld [vmem:[%s11] sm:$0x1]
        %1497 = vmatprep.subr.mxu0 0.0
        %1498 = vmatpush1.msra.mxu0 %v1480
        %1499 = vmatprep.subr.mxu0 0.0
        %1500 = vmatpush1.msra.mxu0 %v1481
        %1501 = vmatprep.subr.mxu0 0.0
        %1502 = vmatpush1.msra.mxu0 %v1482
        %1503 = vmatprep.subr.mxu0 0.0
        %1504 = vmatpush1.msra.mxu0 %v1483
        %1505 = vmatprep.subr.mxu0 0.0
        %1506 = vmatpush1.msra.mxu0 %v1484
        %1507 = vmatprep.subr.mxu0 0.0
        %1508 = vmatpush1.msra.mxu0 %v1485
        %1509 = vmatprep.subr.mxu0 0.0
        %1510 = vmatpush1.msra.mxu0 %v1486
        %1511 = vmatprep.subr.mxu0 0.0
        %1512 = vmatpush1.msra.mxu0 %v1487
        %1513 = vmatprep.subr.mxu0 0.0
        %1514 = vmatpush1.msra.mxu0 %v1488
        %1515 = vmatprep.subr.mxu0 0.0
        %1516 = vmatpush1.msra.mxu0 %v1489
        %1517 = vmatprep.subr.mxu0 0.0
        %1518 = vmatpush1.msra.mxu0 %v1490
        %1519 = vmatprep.subr.mxu0 0.0
        %1520 = vmatpush1.msra.mxu0 %v1491
        %1521 = vmatprep.subr.mxu0 0.0
        %1522 = vmatpush1.msra.mxu0 %v1492
        %1523 = vmatprep.subr.mxu0 0.0
        %1524 = vmatpush1.msra.mxu0 %v1493
        %1525 = vmatprep.subr.mxu0 0.0
        %1526 = vmatpush1.msra.mxu0 %v1494
        %1527 = vmatprep.subr.mxu0 0.0
        %1528 = vmatpush1.msra.mxu0 %v1495
        %1529 = vmatprep.subr.mxu0 0.0
        %1530 = vmatpush1.msra.mxu0 0.0
        %1531 = vmatprep.subr.mxu0 0.0
        %1532 = vmatpush1.msra.mxu0 0.0
        %1533 = vmatprep.subr.mxu0 0.0
        %1534 = vmatpush1.msra.mxu0 0.0
        %1535 = vmatprep.subr.mxu0 0.0
        %1536 = vmatpush1.msra.mxu0 0.0
        %1537 = vmatprep.subr.mxu0 0.0
        %1538 = vmatpush1.msra.mxu0 0.0
        %1539 = vmatprep.subr.mxu0 0.0
        %1540 = vmatpush1.msra.mxu0 0.0
        %1541 = vmatprep.subr.mxu0 0.0
        %1542 = vmatpush1.msra.mxu0 0.0
        %1543 = vmatprep.subr.mxu0 0.0
        %1544 = vmatpush1.msra.mxu0 0.0
        %1545 = vmatprep.subr.mxu0 0.0
        %1546 = vmatpush1.msra.mxu0 0.0
        %1547 = vmatprep.subr.mxu0 0.0
        %1548 = vmatpush1.msra.mxu0 0.0
        %1549 = vmatprep.subr.mxu0 0.0
        %1550 = vmatpush1.msra.mxu0 0.0
        %1551 = vmatprep.subr.mxu0 0.0
        %1552 = vmatpush1.msra.mxu0 0.0
        %1553 = vmatprep.subr.mxu0 0.0
        %1554 = vmatpush1.msra.mxu0 0.0
        %1555 = vmatprep.subr.mxu0 0.0
        %1556 = vmatpush1.msra.mxu0 0.0
        %1557 = vmatprep.subr.mxu0 0.0
        %1558 = vmatpush1.msra.mxu0 0.0
        %1559 = vmatprep.subr.mxu0 0.0
        %1560 = vmatpush1.msra.mxu0 0.0
        %1561 = vmatprep.mubr.f32.mxu0 0.0
        %1562 = vmatmul.mubr.f32.gmra.mrb[0].mxu0 %v1479
        %v1563 = vpop.f32.mrb[0].mxu0
        %v1564 = vadd.f32 %v1496, %v1563
        %v1565 = vpop.f32.mrb[0].mxu0
        %1566 = vdwg.mxu0
        %1567 = vst [vmem:[%s513] sm:$0x1] %v1564
        %p1568 = scmp.lt.s32.totalorder %s31, 1
        %s1569 = scalar_select %p1568, %s31, 1
        %s1570 = smul.addr %s1569, 3
        %s1571 = smul.addr %s1570, 8
        %s1572 = scalar_lea.vmem %s12, %s1571
        %s1573 = sand.u32 %s322, 1
        %s1574 = scalar_lea.sflag [#allocation4], %s1573
        %s1575 = sand.u32 %s322, 1
        %s1576 = scalar_lea.vmem [#allocation11], %s1575
        // Predicated region
        $region89: #{tpu_custom_call.1} parent=67 // pred_check
          %p1577 = pneg %p306
        $region90: #{tpu_custom_call.1} parent=67 // pred_check_branch
          %1579 = sbr.rel (%p1577) target = $region92
        $region91: #{tpu_custom_call.1} parent=67 // pred_region
          _
        $region92: #{tpu_custom_call.1} parent=67 // pred_fallthru
          _
        // Predicated region
        $region93: #{tpu_custom_call.1} parent=67 // pred_check
          %p1580 = pneg %p332
        $region94: #{tpu_custom_call.1} parent=67 // pred_check_branch
          %1582 = sbr.rel (%p1580) target = $region96
        $region95: #{tpu_custom_call.1} parent=67 // pred_region
          %s1584 = ssub.s32 16, 16
          %1585 = vsyncadd %s1574, %s1584
          %s1586 = smul.addr %s31, 16
          %s1587 = scalar_lea.hbm %s13, %s1586
          %s1589 = sshll.u32 %s1576, 4
          %s1590 = int_to_ptr.vmem [resolvable:$true] %s1589
          %1592 = dma.vmem_to_hbm [thread:$0]  %s1590, 16, %s1587, %s1574
        $region96: #{tpu_custom_call.1} parent=67 // pred_fallthru
          _
      $region68: #{tpu_custom_call.1} parent=5 // pred_fallthru
        _
      %p1593 = scmp.le.s32.totalorder 2, %s26
      // Predicated region
      $region97: #{tpu_custom_call.1} parent=5 // pred_check
        %p1594 = pneg %p1593
      $region98: #{tpu_custom_call.1} parent=5 // pred_check_branch
        %1596 = sbr.rel (%p1594) target = $region100
      $region99: #{tpu_custom_call.1} parent=5 // pred_region
        %s1597 = ssub.s32 %s26, 2
        // Predicated region
        $region101: #{tpu_custom_call.1} parent=99 // pred_check
          %p1598 = pneg %p312
        $region102: #{tpu_custom_call.1} parent=99 // pred_check_branch
          %1600 = sbr.rel (%p1598) target = $region104
        $region103: #{tpu_custom_call.1} parent=99 // pred_region
          %p1601 = scmp.lt.s32.totalorder %s32, 1
          %s1602 = scalar_select %p1601, %s32, 1
          %s1603 = smul.addr %s1602, 3
          %s1604 = smul.addr %s1603, 8
          %s1605 = scalar_lea.vmem %s12, %s1604
        $region104: #{tpu_custom_call.1} parent=99 // pred_fallthru
          _
        // Predicated region
        $region105: #{tpu_custom_call.1} parent=99 // pred_check
          %p1606 = pneg %p338
        $region106: #{tpu_custom_call.1} parent=99 // pred_check_branch
          %1608 = sbr.rel (%p1606) target = $region108
        $region107: #{tpu_custom_call.1} parent=99 // pred_region
          %s1609 = sand.u32 %s323, 1
          %s1610 = scalar_lea.sflag [#allocation4], %s1609
          %s1611 = sand.u32 %s323, 1
          %s1612 = scalar_lea.vmem [#allocation11], %s1611
          %1613 = dma.done %s1610, 16
        $region108: #{tpu_custom_call.1} parent=99 // pred_fallthru
          _
      $region100: #{tpu_custom_call.1} parent=5 // pred_fallthru
        _
    $region6: #{tpu_custom_call.1} parent=1 // loop_footer
      %s30 = sadd.s32 1, %s26
    $region7: #{tpu_custom_call.1} parent=1 // loop_footer_branch
      %25 = sbr.rel target = $region3
    $region8: #{tpu_custom_call.1} parent=1 // loop_exit
      _
    %1614 = vsyncpa [#allocation3], 1
    %s1615 = scalar_lea.sflag [#allocation3], 1
    %1616 = vsyncpa %s1615, 1
    %1617 = vsyncpa [#allocation6], 1
    %1618 = vsyncpa [#allocation9], 1
    %1619 = vsyncpa [#allocation4], 1
    %s1620 = scalar_lea.sflag [#allocation4], 1
    %1621 = vsyncpa %s1620, 1

</llo_original>
